<compile_context>
chip_gen: v6e
topology: v6e:2x2x1
jax: 0.10.0
libtpu: 0.0.40
codegen_flags: <defaults>
</compile_context>

<pallas_src>
import functools

import jax
import jax.numpy as jnp
from jax.experimental import pallas as pl
from jax.experimental.pallas import tpu as pltpu

ANCHOR_NUM = 2
FEAT_IN = 16
CLS_OUT = 2 * ANCHOR_NUM   # 4
LOC_OUT = 4 * ANCHOR_NUM   # 8
LANE = 128


# ----------------------------------------------------------------------------
# Pallas kernels
# ----------------------------------------------------------------------------
def _conv_mm_kernel(w_ref, a_ref, b_ref, o_ref, *, relu):
    # w: (O, K) bf16, a: (K, Mblk) bf16, b: (O, 1) f32 -> o: (O, Mblk) f32
    acc = jnp.dot(w_ref[...], a_ref[...], preferred_element_type=jnp.float32)
    acc = acc + b_ref[...]
    if relu:
        acc = jnp.maximum(acc, 0.0)
    o_ref[...] = acc


def _head_conv_kernel(wt_ref, az_ref, bt_ref, ws_ref, ax_ref, bs_ref,
                      t_ref, s_ref):
    # Template branch (cls+loc fused along output channels) and search branch
    # (cls+loc fused) in one call.
    t_ref[...] = (jnp.dot(wt_ref[...], az_ref[...],
                          preferred_element_type=jnp.float32) + bt_ref[...])
    s_ref[...] = (jnp.dot(ws_ref[...], ax_ref[...],
                          preferred_element_type=jnp.float32) + bs_ref[...])


def _xcorr_adjust_kernel(ckT_ref, lkT_ref, cf_ref, lf_ref, adjT_ref, adjb_ref,
                         cls_ref, loc_ref, *, batch, hw, chan):
    # Per-batch 1x1-template cross-correlation (== matmul) for both heads plus
    # the 1x1 loc_adjust conv, all inside a single grid=(1,) call.
    adjT = adjT_ref[...]                       # (8, 8)  == adj_w^T
    adjb = adjb_ref[...]                       # (1, 8)
    for b in range(batch):                     # B is tiny; unrolled statically
        ckT = ckT_ref[b * chan:(b + 1) * chan, :]   # (C, 4)
        lkT = lkT_ref[b * chan:(b + 1) * chan, :]   # (C, 8)
        cf = cf_ref[b * hw:(b + 1) * hw, :]         # (HW, C)
        lf = lf_ref[b * hw:(b + 1) * hw, :]         # (HW, C)
        clsT = jnp.dot(cf, ckT, preferred_element_type=jnp.float32)   # (HW, 4)
        locT = jnp.dot(lf, lkT, preferred_element_type=jnp.float32)   # (HW, 8)
        locT = jnp.dot(locT, adjT, preferred_element_type=jnp.float32) + adjb
        cls_ref[b * hw:(b + 1) * hw, :] = clsT
        loc_ref[b * hw:(b + 1) * hw, :] = locT


# ----------------------------------------------------------------------------
# Wrappers
# ----------------------------------------------------------------------------
def _round_up(x, m):
    return (x + m - 1) // m * m


def fused_matmul_bias(w2, at, bias, *, relu):
    """(O,K) @ (K,M) + bias -> (O,M) f32.

    Lane-dense in M; M is tiled into 2 lane-aligned blocks (parallel grid) when
    large enough so v7x's two TensorCores are both used.
    """
    O, K = w2.shape
    M = at.shape[1]
    nblk = 2 if M >= 256 else 1
    Mpad = _round_up(M, nblk * LANE) if nblk > 1 else M
    if Mpad != M:
        at = jnp.pad(at, ((0, 0), (0, Mpad - M)))
    blk = Mpad // nblk
    out = pl.pallas_call(
        functools.partial(_conv_mm_kernel, relu=relu),
        out_shape=jax.ShapeDtypeStruct((O, Mpad), jnp.float32),
        grid=(nblk,),
        in_specs=[
            pl.BlockSpec((O, K), lambda i: (0, 0)),
            pl.BlockSpec((K, blk), lambda i: (0, i)),
            pl.BlockSpec((O, 1), lambda i: (0, 0)),
        ],
        out_specs=pl.BlockSpec((O, blk), lambda i: (0, i)),
        compiler_params=pltpu.CompilerParams(
            dimension_semantics=("parallel",)),
    )(w2.astype(jnp.bfloat16), at.astype(jnp.bfloat16),
      bias.reshape(O, 1).astype(jnp.float32))
    return out[:, :M]


def im2col_T(x, kh, kw, stride):
    """x: (C,B,H,W) -> (C*kh*kw, B*Ho*Wo); K order = (c,i,j), matching
    w.reshape(O, C*kh*kw). Transposed layout so K lands on sublanes and the
    large M dimension lands on lanes."""
    C, B, H, W = x.shape
    Ho = (H - kh) // stride + 1
    Wo = (W - kw) // stride + 1
    cols = []
    for i in range(kh):
        for j in range(kw):
            cols.append(x[:, :, i:i + (Ho - 1) * stride + 1:stride,
                              j:j + (Wo - 1) * stride + 1:stride])
    col = jnp.stack(cols, axis=1)                       # (C, kh*kw, B, Ho, Wo)
    return col.reshape(C * kh * kw, B * Ho * Wo), Ho, Wo


def conv_shared(xs, w, b, *, stride, relu):
    """Shared-weight Conv2d (valid padding) applied to several CBHW inputs via
    one fused Pallas matmul (patch matrices concatenated along M)."""
    O, C, kh, kw = w.shape
    ats, metas = [], []
    for x in xs:
        at, Ho, Wo = im2col_T(x, kh, kw, stride)
        ats.append(at)
        metas.append((x.shape[1], Ho, Wo))
    at_all = jnp.concatenate(ats, axis=1) if len(ats) > 1 else ats[0]
    out = fused_matmul_bias(w.reshape(O, C * kh * kw), at_all, b, relu=relu)
    outs, off = [], 0
    for (B, Ho, Wo) in metas:
        m = B * Ho * Wo
        outs.append(out[:, off:off + m].reshape(O, B, Ho, Wo))   # CBHW
        off += m
    return outs


# ----------------------------------------------------------------------------
# Model definition (deterministic synthetic parameters)
# ----------------------------------------------------------------------------
def init_conv(key, o, c, kh, kw, w_scale=0.1):
    kw_, kb_ = jax.random.split(key)
    w = jax.random.normal(kw_, (o, c, kh, kw), jnp.float32) * w_scale
    b = jax.random.normal(kb_, (o,), jnp.float32) * 0.01
    return w, b


def init_params(seed=0):
    keys = jax.random.split(jax.random.PRNGKey(seed), 8)
    p = {}
    # Backbone: 3 strided convs, total stride 8 (== cell_size in SiamRPN).
    p["c1_w"], p["c1_b"] = init_conv(keys[0], 8, 3, 3, 3)
    p["c2_w"], p["c2_b"] = init_conv(keys[1], 16, 8, 3, 3)
    p["c3_w"], p["c3_b"] = init_conv(keys[2], FEAT_IN, 16, 3, 3)
    # RPN head (UPChannel style).
    p["t_cls_w"], p["t_cls_b"] = init_conv(keys[3], FEAT_IN * CLS_OUT, FEAT_IN, 3, 3)
    p["t_loc_w"], p["t_loc_b"] = init_conv(keys[4], FEAT_IN * LOC_OUT, FEAT_IN, 3, 3)
    p["s_cls_w"], p["s_cls_b"] = init_conv(keys[5], FEAT_IN, FEAT_IN, 3, 3)
    p["s_loc_w"], p["s_loc_b"] = init_conv(keys[6], FEAT_IN, FEAT_IN, 3, 3)
    p["adj_w"], p["adj_b"] = init_conv(keys[7], LOC_OUT, LOC_OUT, 1, 1)
    return p


def backbone_shared(p, z, x):
    z, x = conv_shared([z, x], p["c1_w"], p["c1_b"], stride=2, relu=True)
    z, x = conv_shared([z, x], p["c2_w"], p["c2_b"], stride=2, relu=True)
    z, x = conv_shared([z, x], p["c3_w"], p["c3_b"], stride=2, relu=True)
    return z, x


def head_convs(p, z_feat, x_feat):
    """Template conv (cls+loc fused, N=192) and search conv (cls+loc fused,
    N=32) in one Pallas call. Inputs are CBHW feature maps."""
    at_z, hz, wz = im2col_T(z_feat, 3, 3, 1)     # (144, B)
    at_x, ho, wo = im2col_T(x_feat, 3, 3, 1)     # (144, B*Hs*Ws)
    # TODO(synk): with real SiamRPN crop sizes the template kernel is >1x1 and
    # a true grouped correlation is needed; this path assumes 1x1.
    assert hz == 1 and wz == 1
    C = z_feat.shape[0]
    K = C * 9
    wt = jnp.concatenate([p["t_cls_w"].reshape(FEAT_IN * CLS_OUT, K),
                          p["t_loc_w"].reshape(FEAT_IN * LOC_OUT, K)], axis=0)
    bt = jnp.concatenate([p["t_cls_b"], p["t_loc_b"]]).reshape(-1, 1)
    ws = jnp.concatenate([p["s_cls_w"].reshape(FEAT_IN, K),
                          p["s_loc_w"].reshape(FEAT_IN, K)], axis=0)
    bs = jnp.concatenate([p["s_cls_b"], p["s_loc_b"]]).reshape(-1, 1)

    Nt, Ns = wt.shape[0], ws.shape[0]
    Mz, Mx = at_z.shape[1], at_x.shape[1]
    t_out, s_out = pl.pallas_call(
        _head_conv_kernel,
        out_shape=(jax.ShapeDtypeStruct((Nt, Mz), jnp.float32),
                   jax.ShapeDtypeStruct((Ns, Mx), jnp.float32)),
        grid=(1,),
        in_specs=[
            pl.BlockSpec((Nt, K), lambda i: (0, 0)),
            pl.BlockSpec((K, Mz), lambda i: (0, 0)),
            pl.BlockSpec((Nt, 1), lambda i: (0, 0)),
            pl.BlockSpec((Ns, K), lambda i: (0, 0)),
            pl.BlockSpec((K, Mx), lambda i: (0, 0)),
            pl.BlockSpec((Ns, 1), lambda i: (0, 0)),
        ],
        out_specs=(pl.BlockSpec((Nt, Mz), lambda i: (0, 0)),
                   pl.BlockSpec((Ns, Mx), lambda i: (0, 0))),
    )(wt.astype(jnp.bfloat16), at_z.astype(jnp.bfloat16), bt.astype(jnp.float32),
      ws.astype(jnp.bfloat16), at_x.astype(jnp.bfloat16), bs.astype(jnp.float32))
    return t_out, s_out, (ho, wo)


def xcorr_adjust(p, t_out, s_out, batch, hw):
    """One Pallas call for both cross-correlations + 1x1 loc_adjust conv."""
    C = FEAT_IN
    # (B*C, 4): rows (b, c), cols a  — ckT[b*C+c, a] = ck[b, a, c]
    ckT = (t_out[:C * CLS_OUT, :].reshape(CLS_OUT, C, batch)
           .transpose(2, 1, 0).reshape(batch * C, CLS_OUT))
    lkT = (t_out[C * CLS_OUT:, :].reshape(LOC_OUT, C, batch)
           .transpose(2, 1, 0).reshape(batch * C, LOC_OUT))
    cf = s_out[:C, :].T                          # (B*HW, C)
    lf = s_out[C:, :].T                          # (B*HW, C)
    adjT = p["adj_w"].reshape(LOC_OUT, LOC_OUT).T
    adjb = p["adj_b"].reshape(1, LOC_OUT)

    clsT, locT = pl.pallas_call(
        functools.partial(_xcorr_adjust_kernel, batch=batch, hw=hw, chan=C),
        out_shape=(jax.ShapeDtypeStruct((batch * hw, CLS_OUT), jnp.float32),
                   jax.ShapeDtypeStruct((batch * hw, LOC_OUT), jnp.float32)),
        grid=(1,),
        in_specs=[
            pl.BlockSpec((batch * C, CLS_OUT), lambda i: (0, 0)),
            pl.BlockSpec((batch * C, LOC_OUT), lambda i: (0, 0)),
            pl.BlockSpec((batch * hw, C), lambda i: (0, 0)),
            pl.BlockSpec((batch * hw, C), lambda i: (0, 0)),
            pl.BlockSpec((LOC_OUT, LOC_OUT), lambda i: (0, 0)),
            pl.BlockSpec((1, LOC_OUT), lambda i: (0, 0)),
        ],
        out_specs=(pl.BlockSpec((batch * hw, CLS_OUT), lambda i: (0, 0)),
                   pl.BlockSpec((batch * hw, LOC_OUT), lambda i: (0, 0))),
    )(ckT, lkT, cf, lf, adjT, adjb)
    return clsT, locT


def siamrpn_forward(p, exemplar_img, instance_img):
    # BGR -> RGB channel flip, then internal CBHW layout.
    z = exemplar_img[:, ::-1, :, :].transpose(1, 0, 2, 3)   # (C, B, H, W)
    x = instance_img[:, ::-1, :, :].transpose(1, 0, 2, 3)
    B = exemplar_img.shape[0]

    z_feat, x_feat = backbone_shared(p, z, x)        # neck is None
    t_out, s_out, (ho, wo) = head_convs(p, z_feat, x_feat)
    hw = ho * wo
    clsT, locT = xcorr_adjust(p, t_out, s_out, B, hw)

    cls = clsT.reshape(B, ho, wo, CLS_OUT).transpose(0, 3, 1, 2)
    loc = locT.reshape(B, ho, wo, LOC_OUT).transpose(0, 3, 1, 2)
    return cls, loc


# ----------------------------------------------------------------------------
if __name__ == "__main__":
    params = init_params(seed=0)
    k1, k2 = jax.random.split(jax.random.PRNGKey(0))
    exemplar = jax.random.normal(k1, (2, 3, 32, 32), jnp.float32)  # template crop
    instance = jax.random.normal(k2, (2, 3, 48, 48), jnp.float32)  # search crop

    cls, loc = jax.jit(siamrpn_forward)(params, exemplar, instance)
    jax.block_until_ready((cls, loc))

    assert cls.shape == (2, CLS_OUT, 3, 3), cls.shape
    assert loc.shape == (2, LOC_OUT, 3, 3), loc.shape
    print("KERNEL_OK")
</pallas_src>

<mosaic_0001>
module attributes {stable_mosaic.version = 11 : i64} {
  func.func @_conv_mm_kernel(%arg0: i32, %arg1: memref<8x27xbf16, #tpu.memory_space<vmem>>, %arg2: memref<27x768xbf16, #tpu.memory_space<vmem>>, %arg3: memref<8x1xf32, #tpu.memory_space<vmem>>, %arg4: memref<8x768xf32, #tpu.memory_space<vmem>>) attributes {dimension_semantics = [#tpu.dimension_semantics<parallel>], iteration_bounds = array<i64: 2>, scalar_prefetch = 0 : i64, scratch_operands = 0 : i64, tpu.core_type = #tpu.core_type<tc>, window_params = [{pipeline_mode = #tpu.pipeline_mode<synchronous>, transform_indices = @transform_0, window_bounds = array<i64: 8, 27>}, {transform_indices = @transform_1, window_bounds = array<i64: 27, 768>}, {pipeline_mode = #tpu.pipeline_mode<synchronous>, transform_indices = @transform_2, window_bounds = array<i64: 8, 1>}, {transform_indices = @transform_3, window_bounds = array<i64: 8, 768>}]} {
    %c0 = arith.constant 0 : index
    %c0_0 = arith.constant 0 : index
    %0 = vector.load %arg1[%c0, %c0_0] : memref<8x27xbf16, #tpu.memory_space<vmem>>, vector<8x27xbf16>
    %c0_1 = arith.constant 0 : index
    %c0_2 = arith.constant 0 : index
    %1 = vector.load %arg2[%c0_1, %c0_2] : memref<27x768xbf16, #tpu.memory_space<vmem>>, vector<27x768xbf16>
    %cst = arith.constant dense<0.000000e+00> : vector<8x768xf32>
    %2 = tpu.matmul %0, %1, %cst {dimension_numbers = #tpu.dot_dimension_numbers<[1], [0], [0], [1], [0, 0, 1, 1], [], []>} : vector<8x27xbf16>, vector<27x768xbf16>, vector<8x768xf32> -> vector<8x768xf32>
    %c0_3 = arith.constant 0 : index
    %c0_4 = arith.constant 0 : index
    %3 = vector.load %arg3[%c0_3, %c0_4] : memref<8x1xf32, #tpu.memory_space<vmem>>, vector<8x1xf32>
    %4 = vector.broadcast %3 : vector<8x1xf32> to vector<8x768xf32>
    %5 = arith.addf %2, %4 : vector<8x768xf32>
    %cst_5 = arith.constant 0.000000e+00 : f32
    %6 = vector.broadcast %cst_5 : f32 to vector<8x768xf32>
    %7 = arith.maximumf %5, %6 : vector<8x768xf32>
    %c0_6 = arith.constant 0 : index
    %c0_7 = arith.constant 0 : index
    %8 = vector.load %arg4[%c0_6, %c0_7] : memref<8x768xf32, #tpu.memory_space<vmem>>, vector<8x768xf32>
    tpu.vector_store %arg4[%c0_6, %c0_7], %7 {strides = array<i32>} : memref<8x768xf32, #tpu.memory_space<vmem>>, vector<8x768xf32>,
    return
  }
  func.func @transform_0(%arg0: i32) -> (i32, i32) {
    %c0_i32 = arith.constant 0 : i32
    %c0_i32_0 = arith.constant 0 : i32
    %c0_i32_1 = arith.constant 0 : i32
    return %c0_i32, %c0_i32_0 : i32, i32
  }
  func.func @transform_1(%arg0: i32) -> (i32, i32) {
    %c0_i32 = arith.constant 0 : i32
    %c0_i32_0 = arith.constant 0 : i32
    return %c0_i32, %arg0 : i32, i32
  }
  func.func @transform_2(%arg0: i32) -> (i32, i32) {
    %c0_i32 = arith.constant 0 : i32
    %c0_i32_0 = arith.constant 0 : i32
    %c0_i32_1 = arith.constant 0 : i32
    return %c0_i32, %c0_i32_0 : i32, i32
  }
  func.func @transform_3(%arg0: i32) -> (i32, i32) {
    %c0_i32 = arith.constant 0 : i32
    %c0_i32_0 = arith.constant 0 : i32
    return %c0_i32, %arg0 : i32, i32
  }
}

module attributes {stable_mosaic.version = 11 : i64} {
  func.func @_conv_mm_kernel(%arg0: i32, %arg1: memref<16x72xbf16, #tpu.memory_space<vmem>>, %arg2: memref<72x256xbf16, #tpu.memory_space<vmem>>, %arg3: memref<16x1xf32, #tpu.memory_space<vmem>>, %arg4: memref<16x256xf32, #tpu.memory_space<vmem>>) attributes {dimension_semantics = [#tpu.dimension_semantics<parallel>], iteration_bounds = array<i64: 2>, scalar_prefetch = 0 : i64, scratch_operands = 0 : i64, tpu.core_type = #tpu.core_type<tc>, window_params = [{pipeline_mode = #tpu.pipeline_mode<synchronous>, transform_indices = @transform_0, window_bounds = array<i64: 16, 72>}, {transform_indices = @transform_1, window_bounds = array<i64: 72, 256>}, {pipeline_mode = #tpu.pipeline_mode<synchronous>, transform_indices = @transform_2, window_bounds = array<i64: 16, 1>}, {transform_indices = @transform_3, window_bounds = array<i64: 16, 256>}]} {
    %c0 = arith.constant 0 : index
    %c0_0 = arith.constant 0 : index
    %0 = vector.load %arg1[%c0, %c0_0] : memref<16x72xbf16, #tpu.memory_space<vmem>>, vector<16x72xbf16>
    %c0_1 = arith.constant 0 : index
    %c0_2 = arith.constant 0 : index
    %1 = vector.load %arg2[%c0_1, %c0_2] : memref<72x256xbf16, #tpu.memory_space<vmem>>, vector<72x256xbf16>
    %cst = arith.constant dense<0.000000e+00> : vector<16x256xf32>
    %2 = tpu.matmul %0, %1, %cst {dimension_numbers = #tpu.dot_dimension_numbers<[1], [0], [0], [1], [0, 0, 1, 1], [], []>} : vector<16x72xbf16>, vector<72x256xbf16>, vector<16x256xf32> -> vector<16x256xf32>
    %c0_3 = arith.constant 0 : index
    %c0_4 = arith.constant 0 : index
    %3 = vector.load %arg3[%c0_3, %c0_4] : memref<16x1xf32, #tpu.memory_space<vmem>>, vector<16x1xf32>
    %4 = vector.broadcast %3 : vector<16x1xf32> to vector<16x256xf32>
    %5 = arith.addf %2, %4 : vector<16x256xf32>
    %cst_5 = arith.constant 0.000000e+00 : f32
    %6 = vector.broadcast %cst_5 : f32 to vector<16x256xf32>
    %7 = arith.maximumf %5, %6 : vector<16x256xf32>
    %c0_6 = arith.constant 0 : index
    %c0_7 = arith.constant 0 : index
    %8 = vector.load %arg4[%c0_6, %c0_7] : memref<16x256xf32, #tpu.memory_space<vmem>>, vector<16x256xf32>
    tpu.vector_store %arg4[%c0_6, %c0_7], %7 {strides = array<i32>} : memref<16x256xf32, #tpu.memory_space<vmem>>, vector<16x256xf32>,
    return
  }
  func.func @transform_0(%arg0: i32) -> (i32, i32) {
    %c0_i32 = arith.constant 0 : i32
    %c0_i32_0 = arith.constant 0 : i32
    %c0_i32_1 = arith.constant 0 : i32
    return %c0_i32, %c0_i32_0 : i32, i32
  }
  func.func @transform_1(%arg0: i32) -> (i32, i32) {
    %c0_i32 = arith.constant 0 : i32
    %c0_i32_0 = arith.constant 0 : i32
    return %c0_i32, %arg0 : i32, i32
  }
  func.func @transform_2(%arg0: i32) -> (i32, i32) {
    %c0_i32 = arith.constant 0 : i32
    %c0_i32_0 = arith.constant 0 : i32
    %c0_i32_1 = arith.constant 0 : i32
    return %c0_i32, %c0_i32_0 : i32, i32
  }
  func.func @transform_3(%arg0: i32) -> (i32, i32) {
    %c0_i32 = arith.constant 0 : i32
    %c0_i32_0 = arith.constant 0 : i32
    return %c0_i32, %arg0 : i32, i32
  }
}

module attributes {stable_mosaic.version = 11 : i64} {
  func.func @_conv_mm_kernel(%arg0: i32, %arg1: memref<16x144xbf16, #tpu.memory_space<vmem>>, %arg2: memref<144x68xbf16, #tpu.memory_space<vmem>>, %arg3: memref<16x1xf32, #tpu.memory_space<vmem>>, %arg4: memref<16x68xf32, #tpu.memory_space<vmem>>) attributes {dimension_semantics = [#tpu.dimension_semantics<parallel>], iteration_bounds = array<i64: 1>, scalar_prefetch = 0 : i64, scratch_operands = 0 : i64, tpu.core_type = #tpu.core_type<tc>, window_params = [{pipeline_mode = #tpu.pipeline_mode<synchronous>, transform_indices = @transform_0, window_bounds = array<i64: 16, 144>}, {transform_indices = @transform_1, window_bounds = array<i64: 144, 68>}, {pipeline_mode = #tpu.pipeline_mode<synchronous>, transform_indices = @transform_2, window_bounds = array<i64: 16, 1>}, {transform_indices = @transform_3, window_bounds = array<i64: 16, 68>}]} {
    %c0 = arith.constant 0 : index
    %c0_0 = arith.constant 0 : index
    %0 = vector.load %arg1[%c0, %c0_0] : memref<16x144xbf16, #tpu.memory_space<vmem>>, vector<16x144xbf16>
    %c0_1 = arith.constant 0 : index
    %c0_2 = arith.constant 0 : index
    %1 = vector.load %arg2[%c0_1, %c0_2] : memref<144x68xbf16, #tpu.memory_space<vmem>>, vector<144x68xbf16>
    %cst = arith.constant dense<0.000000e+00> : vector<16x68xf32>
    %2 = tpu.matmul %0, %1, %cst {dimension_numbers = #tpu.dot_dimension_numbers<[1], [0], [0], [1], [0, 0, 1, 1], [], []>} : vector<16x144xbf16>, vector<144x68xbf16>, vector<16x68xf32> -> vector<16x68xf32>
    %c0_3 = arith.constant 0 : index
    %c0_4 = arith.constant 0 : index
    %3 = vector.load %arg3[%c0_3, %c0_4] : memref<16x1xf32, #tpu.memory_space<vmem>>, vector<16x1xf32>
    %4 = vector.broadcast %3 : vector<16x1xf32> to vector<16x68xf32>
    %5 = arith.addf %2, %4 : vector<16x68xf32>
    %cst_5 = arith.constant 0.000000e+00 : f32
    %6 = vector.broadcast %cst_5 : f32 to vector<16x68xf32>
    %7 = arith.maximumf %5, %6 : vector<16x68xf32>
    %c0_6 = arith.constant 0 : index
    %c0_7 = arith.constant 0 : index
    %8 = vector.load %arg4[%c0_6, %c0_7] : memref<16x68xf32, #tpu.memory_space<vmem>>, vector<16x68xf32>
    tpu.vector_store %arg4[%c0_6, %c0_7], %7 {strides = array<i32>} : memref<16x68xf32, #tpu.memory_space<vmem>>, vector<16x68xf32>,
    return
  }
  func.func @transform_0(%arg0: i32) -> (i32, i32) {
    %c0_i32 = arith.constant 0 : i32
    %c0_i32_0 = arith.constant 0 : i32
    %c0_i32_1 = arith.constant 0 : i32
    return %c0_i32, %c0_i32_0 : i32, i32
  }
  func.func @transform_1(%arg0: i32) -> (i32, i32) {
    %c0_i32 = arith.constant 0 : i32
    %c0_i32_0 = arith.constant 0 : i32
    return %c0_i32, %arg0 : i32, i32
  }
  func.func @transform_2(%arg0: i32) -> (i32, i32) {
    %c0_i32 = arith.constant 0 : i32
    %c0_i32_0 = arith.constant 0 : i32
    %c0_i32_1 = arith.constant 0 : i32
    return %c0_i32, %c0_i32_0 : i32, i32
  }
  func.func @transform_3(%arg0: i32) -> (i32, i32) {
    %c0_i32 = arith.constant 0 : i32
    %c0_i32_0 = arith.constant 0 : i32
    return %c0_i32, %arg0 : i32, i32
  }
}

module attributes {stable_mosaic.version = 11 : i64} {
  func.func @_head_conv_kernel(%arg0: i32, %arg1: memref<192x144xbf16, #tpu.memory_space<vmem>>, %arg2: memref<144x2xbf16, #tpu.memory_space<vmem>>, %arg3: memref<192x1xf32, #tpu.memory_space<vmem>>, %arg4: memref<32x144xbf16, #tpu.memory_space<vmem>>, %arg5: memref<144x18xbf16, #tpu.memory_space<vmem>>, %arg6: memref<32x1xf32, #tpu.memory_space<vmem>>, %arg7: memref<192x2xf32, #tpu.memory_space<vmem>>, %arg8: memref<32x18xf32, #tpu.memory_space<vmem>>) attributes {dimension_semantics = [#tpu.dimension_semantics<arbitrary>], iteration_bounds = array<i64: 1>, scalar_prefetch = 0 : i64, scratch_operands = 0 : i64, tpu.core_type = #tpu.core_type<tc>, window_params = [{pipeline_mode = #tpu.pipeline_mode<synchronous>, transform_indices = @transform_0, window_bounds = array<i64: 192, 144>}, {pipeline_mode = #tpu.pipeline_mode<synchronous>, transform_indices = @transform_1, window_bounds = array<i64: 144, 2>}, {pipeline_mode = #tpu.pipeline_mode<synchronous>, transform_indices = @transform_2, window_bounds = array<i64: 192, 1>}, {pipeline_mode = #tpu.pipeline_mode<synchronous>, transform_indices = @transform_3, window_bounds = array<i64: 32, 144>}, {pipeline_mode = #tpu.pipeline_mode<synchronous>, transform_indices = @transform_4, window_bounds = array<i64: 144, 18>}, {pipeline_mode = #tpu.pipeline_mode<synchronous>, transform_indices = @transform_5, window_bounds = array<i64: 32, 1>}, {pipeline_mode = #tpu.pipeline_mode<synchronous>, transform_indices = @transform_6, window_bounds = array<i64: 192, 2>}, {pipeline_mode = #tpu.pipeline_mode<synchronous>, transform_indices = @transform_7, window_bounds = array<i64: 32, 18>}]} {
    %c0 = arith.constant 0 : index
    %c0_0 = arith.constant 0 : index
    %0 = vector.load %arg1[%c0, %c0_0] : memref<192x144xbf16, #tpu.memory_space<vmem>>, vector<192x144xbf16>
    %c0_1 = arith.constant 0 : index
    %c0_2 = arith.constant 0 : index
    %1 = vector.load %arg2[%c0_1, %c0_2] : memref<144x2xbf16, #tpu.memory_space<vmem>>, vector<144x2xbf16>
    %cst = arith.constant dense<0.000000e+00> : vector<192x2xf32>
    %2 = tpu.matmul %0, %1, %cst {dimension_numbers = #tpu.dot_dimension_numbers<[1], [0], [0], [1], [0, 0, 1, 1], [], []>} : vector<192x144xbf16>, vector<144x2xbf16>, vector<192x2xf32> -> vector<192x2xf32>
    %c0_3 = arith.constant 0 : index
    %c0_4 = arith.constant 0 : index
    %3 = vector.load %arg3[%c0_3, %c0_4] : memref<192x1xf32, #tpu.memory_space<vmem>>, vector<192x1xf32>
    %4 = vector.broadcast %3 : vector<192x1xf32> to vector<192x2xf32>
    %5 = arith.addf %2, %4 : vector<192x2xf32>
    %c0_5 = arith.constant 0 : index
    %c0_6 = arith.constant 0 : index
    %6 = vector.load %arg7[%c0_5, %c0_6] : memref<192x2xf32, #tpu.memory_space<vmem>>, vector<192x2xf32>
    tpu.vector_store %arg7[%c0_5, %c0_6], %5 {strides = array<i32>} : memref<192x2xf32, #tpu.memory_space<vmem>>, vector<192x2xf32>,
    %c0_7 = arith.constant 0 : index
    %c0_8 = arith.constant 0 : index
    %7 = vector.load %arg4[%c0_7, %c0_8] : memref<32x144xbf16, #tpu.memory_space<vmem>>, vector<32x144xbf16>
    %c0_9 = arith.constant 0 : index
    %c0_10 = arith.constant 0 : index
    %8 = vector.load %arg5[%c0_9, %c0_10] : memref<144x18xbf16, #tpu.memory_space<vmem>>, vector<144x18xbf16>
    %cst_11 = arith.constant dense<0.000000e+00> : vector<32x18xf32>
    %9 = tpu.matmul %7, %8, %cst_11 {dimension_numbers = #tpu.dot_dimension_numbers<[1], [0], [0], [1], [0, 0, 1, 1], [], []>} : vector<32x144xbf16>, vector<144x18xbf16>, vector<32x18xf32> -> vector<32x18xf32>
    %c0_12 = arith.constant 0 : index
    %c0_13 = arith.constant 0 : index
    %10 = vector.load %arg6[%c0_12, %c0_13] : memref<32x1xf32, #tpu.memory_space<vmem>>, vector<32x1xf32>
    %11 = vector.broadcast %10 : vector<32x1xf32> to vector<32x18xf32>
    %12 = arith.addf %9, %11 : vector<32x18xf32>
    %c0_14 = arith.constant 0 : index
    %c0_15 = arith.constant 0 : index
    %13 = vector.load %arg8[%c0_14, %c0_15] : memref<32x18xf32, #tpu.memory_space<vmem>>, vector<32x18xf32>
    tpu.vector_store %arg8[%c0_14, %c0_15], %12 {strides = array<i32>} : memref<32x18xf32, #tpu.memory_space<vmem>>, vector<32x18xf32>,
    return
  }
  func.func @transform_0(%arg0: i32) -> (i32, i32) {
    %c0_i32 = arith.constant 0 : i32
    %c0_i32_0 = arith.constant 0 : i32
    %c0_i32_1 = arith.constant 0 : i32
    return %c0_i32, %c0_i32_0 : i32, i32
  }
  func.func @transform_1(%arg0: i32) -> (i32, i32) {
    %c0_i32 = arith.constant 0 : i32
    %c0_i32_0 = arith.constant 0 : i32
    %c0_i32_1 = arith.constant 0 : i32
    return %c0_i32, %c0_i32_0 : i32, i32
  }
  func.func @transform_2(%arg0: i32) -> (i32, i32) {
    %c0_i32 = arith.constant 0 : i32
    %c0_i32_0 = arith.constant 0 : i32
    %c0_i32_1 = arith.constant 0 : i32
    return %c0_i32, %c0_i32_0 : i32, i32
  }
  func.func @transform_3(%arg0: i32) -> (i32, i32) {
    %c0_i32 = arith.constant 0 : i32
    %c0_i32_0 = arith.constant 0 : i32
    %c0_i32_1 = arith.constant 0 : i32
    return %c0_i32, %c0_i32_0 : i32, i32
  }
  func.func @transform_4(%arg0: i32) -> (i32, i32) {
    %c0_i32 = arith.constant 0 : i32
    %c0_i32_0 = arith.constant 0 : i32
    %c0_i32_1 = arith.constant 0 : i32
    return %c0_i32, %c0_i32_0 : i32, i32
  }
  func.func @transform_5(%arg0: i32) -> (i32, i32) {
    %c0_i32 = arith.constant 0 : i32
    %c0_i32_0 = arith.constant 0 : i32
    %c0_i32_1 = arith.constant 0 : i32
    return %c0_i32, %c0_i32_0 : i32, i32
  }
  func.func @transform_6(%arg0: i32) -> (i32, i32) {
    %c0_i32 = arith.constant 0 : i32
    %c0_i32_0 = arith.constant 0 : i32
    %c0_i32_1 = arith.constant 0 : i32
    return %c0_i32, %c0_i32_0 : i32, i32
  }
  func.func @transform_7(%arg0: i32) -> (i32, i32) {
    %c0_i32 = arith.constant 0 : i32
    %c0_i32_0 = arith.constant 0 : i32
    %c0_i32_1 = arith.constant 0 : i32
    return %c0_i32, %c0_i32_0 : i32, i32
  }
}

module attributes {stable_mosaic.version = 11 : i64} {
  func.func @_xcorr_adjust_kernel(%arg0: i32, %arg1: memref<32x4xf32, #tpu.memory_space<vmem>>, %arg2: memref<32x8xf32, #tpu.memory_space<vmem>>, %arg3: memref<18x16xf32, #tpu.memory_space<vmem>>, %arg4: memref<18x16xf32, #tpu.memory_space<vmem>>, %arg5: memref<8x8xf32, #tpu.memory_space<vmem>>, %arg6: memref<1x8xf32, #tpu.memory_space<vmem>>, %arg7: memref<18x4xf32, #tpu.memory_space<vmem>>, %arg8: memref<18x8xf32, #tpu.memory_space<vmem>>) attributes {dimension_semantics = [#tpu.dimension_semantics<arbitrary>], iteration_bounds = array<i64: 1>, scalar_prefetch = 0 : i64, scratch_operands = 0 : i64, tpu.core_type = #tpu.core_type<tc>, window_params = [{pipeline_mode = #tpu.pipeline_mode<synchronous>, transform_indices = @transform_0, window_bounds = array<i64: 32, 4>}, {pipeline_mode = #tpu.pipeline_mode<synchronous>, transform_indices = @transform_1, window_bounds = array<i64: 32, 8>}, {pipeline_mode = #tpu.pipeline_mode<synchronous>, transform_indices = @transform_2, window_bounds = array<i64: 18, 16>}, {pipeline_mode = #tpu.pipeline_mode<synchronous>, transform_indices = @transform_3, window_bounds = array<i64: 18, 16>}, {pipeline_mode = #tpu.pipeline_mode<synchronous>, transform_indices = @transform_4, window_bounds = array<i64: 8, 8>}, {pipeline_mode = #tpu.pipeline_mode<synchronous>, transform_indices = @transform_5, window_bounds = array<i64: 1, 8>}, {pipeline_mode = #tpu.pipeline_mode<synchronous>, transform_indices = @transform_6, window_bounds = array<i64: 18, 4>}, {pipeline_mode = #tpu.pipeline_mode<synchronous>, transform_indices = @transform_7, window_bounds = array<i64: 18, 8>}]} {
    %c0 = arith.constant 0 : index
    %c0_0 = arith.constant 0 : index
    %0 = vector.load %arg5[%c0, %c0_0] : memref<8x8xf32, #tpu.memory_space<vmem>>, vector<8x8xf32>
    %c0_1 = arith.constant 0 : index
    %c0_2 = arith.constant 0 : index
    %1 = vector.load %arg6[%c0_1, %c0_2] : memref<1x8xf32, #tpu.memory_space<vmem>>, vector<1x8xf32>
    %c0_3 = arith.constant 0 : index
    %c0_4 = arith.constant 0 : index
    %2 = vector.load %arg1[%c0_3, %c0_4] : memref<32x4xf32, #tpu.memory_space<vmem>>, vector<16x4xf32>
    %c0_5 = arith.constant 0 : index
    %c0_6 = arith.constant 0 : index
    %3 = vector.load %arg2[%c0_5, %c0_6] : memref<32x8xf32, #tpu.memory_space<vmem>>, vector<16x8xf32>
    %c0_7 = arith.constant 0 : index
    %c0_8 = arith.constant 0 : index
    %4 = vector.load %arg3[%c0_7, %c0_8] : memref<18x16xf32, #tpu.memory_space<vmem>>, vector<9x16xf32>
    %c0_9 = arith.constant 0 : index
    %c0_10 = arith.constant 0 : index
    %5 = vector.load %arg4[%c0_9, %c0_10] : memref<18x16xf32, #tpu.memory_space<vmem>>, vector<9x16xf32>
    %cst = arith.constant dense<0.000000e+00> : vector<9x4xf32>
    %6 = tpu.matmul %4, %2, %cst {dimension_numbers = #tpu.dot_dimension_numbers<[1], [0], [0], [1], [0, 0, 1, 1], [], []>} : vector<9x16xf32>, vector<16x4xf32>, vector<9x4xf32> -> vector<9x4xf32>
    %cst_11 = arith.constant dense<0.000000e+00> : vector<9x8xf32>
    %7 = tpu.matmul %5, %3, %cst_11 {dimension_numbers = #tpu.dot_dimension_numbers<[1], [0], [0], [1], [0, 0, 1, 1], [], []>} : vector<9x16xf32>, vector<16x8xf32>, vector<9x8xf32> -> vector<9x8xf32>
    %cst_12 = arith.constant dense<0.000000e+00> : vector<9x8xf32>
    %8 = tpu.matmul %7, %0, %cst_12 {dimension_numbers = #tpu.dot_dimension_numbers<[1], [0], [0], [1], [0, 0, 1, 1], [], []>} : vector<9x8xf32>, vector<8x8xf32>, vector<9x8xf32> -> vector<9x8xf32>
    %9 = vector.broadcast %1 : vector<1x8xf32> to vector<9x8xf32>
    %10 = arith.addf %8, %9 : vector<9x8xf32>
    %c0_13 = arith.constant 0 : index
    %c0_14 = arith.constant 0 : index
    %11 = vector.load %arg7[%c0_13, %c0_14] : memref<18x4xf32, #tpu.memory_space<vmem>>, vector<9x4xf32>
    tpu.vector_store %arg7[%c0_13, %c0_14], %6 {strides = array<i32>} : memref<18x4xf32, #tpu.memory_space<vmem>>, vector<9x4xf32>,
    %c0_15 = arith.constant 0 : index
    %c0_16 = arith.constant 0 : index
    %12 = vector.load %arg8[%c0_15, %c0_16] : memref<18x8xf32, #tpu.memory_space<vmem>>, vector<9x8xf32>
    tpu.vector_store %arg8[%c0_15, %c0_16], %10 {strides = array<i32>} : memref<18x8xf32, #tpu.memory_space<vmem>>, vector<9x8xf32>,
    %c16 = arith.constant 16 : index
    %c0_17 = arith.constant 0 : index
    %13 = vector.load %arg1[%c16, %c0_17] : memref<32x4xf32, #tpu.memory_space<vmem>>, vector<16x4xf32>
    %c16_18 = arith.constant 16 : index
    %c0_19 = arith.constant 0 : index
    %14 = vector.load %arg2[%c16_18, %c0_19] : memref<32x8xf32, #tpu.memory_space<vmem>>, vector<16x8xf32>
    %c9 = arith.constant 9 : index
    %c0_20 = arith.constant 0 : index
    %15 = vector.load %arg3[%c9, %c0_20] : memref<18x16xf32, #tpu.memory_space<vmem>>, vector<9x16xf32>
    %c9_21 = arith.constant 9 : index
    %c0_22 = arith.constant 0 : index
    %16 = vector.load %arg4[%c9_21, %c0_22] : memref<18x16xf32, #tpu.memory_space<vmem>>, vector<9x16xf32>
    %cst_23 = arith.constant dense<0.000000e+00> : vector<9x4xf32>
    %17 = tpu.matmul %15, %13, %cst_23 {dimension_numbers = #tpu.dot_dimension_numbers<[1], [0], [0], [1], [0, 0, 1, 1], [], []>} : vector<9x16xf32>, vector<16x4xf32>, vector<9x4xf32> -> vector<9x4xf32>
    %cst_24 = arith.constant dense<0.000000e+00> : vector<9x8xf32>
    %18 = tpu.matmul %16, %14, %cst_24 {dimension_numbers = #tpu.dot_dimension_numbers<[1], [0], [0], [1], [0, 0, 1, 1], [], []>} : vector<9x16xf32>, vector<16x8xf32>, vector<9x8xf32> -> vector<9x8xf32>
    %cst_25 = arith.constant dense<0.000000e+00> : vector<9x8xf32>
    %19 = tpu.matmul %18, %0, %cst_25 {dimension_numbers = #tpu.dot_dimension_numbers<[1], [0], [0], [1], [0, 0, 1, 1], [], []>} : vector<9x8xf32>, vector<8x8xf32>, vector<9x8xf32> -> vector<9x8xf32>
    %20 = vector.broadcast %1 : vector<1x8xf32> to vector<9x8xf32>
    %21 = arith.addf %19, %20 : vector<9x8xf32>
    %c9_26 = arith.constant 9 : index
    %c0_27 = arith.constant 0 : index
    %22 = vector.load %arg7[%c9_26, %c0_27] : memref<18x4xf32, #tpu.memory_space<vmem>>, vector<9x4xf32>
    tpu.vector_store %arg7[%c9_26, %c0_27], %17 {strides = array<i32>} : memref<18x4xf32, #tpu.memory_space<vmem>>, vector<9x4xf32>,
    %c9_28 = arith.constant 9 : index
    %c0_29 = arith.constant 0 : index
    %23 = vector.load %arg8[%c9_28, %c0_29] : memref<18x8xf32, #tpu.memory_space<vmem>>, vector<9x8xf32>
    tpu.vector_store %arg8[%c9_28, %c0_29], %21 {strides = array<i32>} : memref<18x8xf32, #tpu.memory_space<vmem>>, vector<9x8xf32>,
    return
  }
  func.func @transform_0(%arg0: i32) -> (i32, i32) {
    %c0_i32 = arith.constant 0 : i32
    %c0_i32_0 = arith.constant 0 : i32
    %c0_i32_1 = arith.constant 0 : i32
    return %c0_i32, %c0_i32_0 : i32, i32
  }
  func.func @transform_1(%arg0: i32) -> (i32, i32) {
    %c0_i32 = arith.constant 0 : i32
    %c0_i32_0 = arith.constant 0 : i32
    %c0_i32_1 = arith.constant 0 : i32
    return %c0_i32, %c0_i32_0 : i32, i32
  }
  func.func @transform_2(%arg0: i32) -> (i32, i32) {
    %c0_i32 = arith.constant 0 : i32
    %c0_i32_0 = arith.constant 0 : i32
    %c0_i32_1 = arith.constant 0 : i32
    return %c0_i32, %c0_i32_0 : i32, i32
  }
  func.func @transform_3(%arg0: i32) -> (i32, i32) {
    %c0_i32 = arith.constant 0 : i32
    %c0_i32_0 = arith.constant 0 : i32
    %c0_i32_1 = arith.constant 0 : i32
    return %c0_i32, %c0_i32_0 : i32, i32
  }
  func.func @transform_4(%arg0: i32) -> (i32, i32) {
    %c0_i32 = arith.constant 0 : i32
    %c0_i32_0 = arith.constant 0 : i32
    %c0_i32_1 = arith.constant 0 : i32
    return %c0_i32, %c0_i32_0 : i32, i32
  }
  func.func @transform_5(%arg0: i32) -> (i32, i32) {
    %c0_i32 = arith.constant 0 : i32
    %c0_i32_0 = arith.constant 0 : i32
    %c0_i32_1 = arith.constant 0 : i32
    return %c0_i32, %c0_i32_0 : i32, i32
  }
  func.func @transform_6(%arg0: i32) -> (i32, i32) {
    %c0_i32 = arith.constant 0 : i32
    %c0_i32_0 = arith.constant 0 : i32
    %c0_i32_1 = arith.constant 0 : i32
    return %c0_i32, %c0_i32_0 : i32, i32
  }
  func.func @transform_7(%arg0: i32) -> (i32, i32) {
    %c0_i32 = arith.constant 0 : i32
    %c0_i32_0 = arith.constant 0 : i32
    %c0_i32_1 = arith.constant 0 : i32
    return %c0_i32, %c0_i32_0 : i32, i32
  }
}

</mosaic_0001>

<llo_original>
// kernel: siamrpn_forward.5
$region0: #{siamrpn_forward.5}
  #allocation0 [shape = 'u32[]', space=smem, size = 0x4, offset = 0x4, fixed_abs, tag = 'smem constant byte address 0x4 - core index']
  #allocation1 [shape = 'u32[144,128]{1,0:T(1,128)}', space=vmem, size = 0x12000, scoped, tag = 'internal scratch']
  %s0 = inlined_call_operand.vmem [shape: bf16[8,27], index: 0, kind: input, shape index: {}]
  %s1 = inlined_call_operand.vmem [shape: bf16[27,1536], index: 1, kind: input, shape index: {}]
  %s2 = inlined_call_operand.vmem [shape: f32[8,1], index: 2, kind: input, shape index: {}]
  %s3 = inlined_call_operand.vmem [shape: f32[8,1536], index: 3, kind: output, shape index: {}]
  %s4 = sld [smem:[#allocation0]]
  $region68: #{siamrpn_forward.5} parent=0
    _
  %s6 = ssub.s32 1, %s4
  %s7 = scalar_select 0, %s6, %s4
  $region1: #{siamrpn_forward.5} parent=0
    #allocation2 [shape = 'u8[98304]{0}', space=vmem, size = 0x18000, scoped, tag = 'input window, operand 1']
    loop: start=0, step=1, limit=4
    $region2: #{siamrpn_forward.5} parent=1 // loop_pre_header
      _
    $region3: #{siamrpn_forward.5} parent=1 // loop_header
      %s9 = sphi 0, %s13
      %p10 = scmp.ge.s32.totalorder %s9, 4
      %s17 = sphi 0, %s17
      %s19 = sphi 0, %s17
      %s20 = sphi 0, %s19
      %s34 = sphi 0, %s20
      %s40 = sphi 0, %s42
      %s43 = sphi 0, %s40
      %s44 = sphi 0, %s43
      %s60 = sphi 0, %s44
      %s64 = sphi 0, %s64
      %s66 = sphi 0, %s64
      %s67 = sphi 0, %s66
      %s81 = sphi 0, %s67
      %s87 = sphi 0, %s89
      %s90 = sphi 0, %s87
      %s91 = sphi 0, %s90
      %s107 = sphi 0, %s91
    $region4: #{siamrpn_forward.5} parent=1 // loop_header_branch
      %12 = sbr.rel (%p10) target = $region8
    $region5: #{siamrpn_forward.5} parent=1 // loop_body
      %s14 = ssub.s32 %s9, 1
      %s15 = ssub.s32 %s9, 2
      %s16 = sadd.s32 %s9, 1
      %s18 = sadd.s32 %s17, 1
      %p21 = scmp.eq.s32.totalorder %s9, 1
      %p22 = scmp.ne.s32.totalorder %s17, %s19
      %p23 = scmp.eq.s32.totalorder %s9, 0
      %p24 = por %p22, %p23
      %p25 = scmp.ne.s32.totalorder %s17, %s19
      %p26 = scmp.eq.s32.totalorder %s14, 1
      %p27 = por %p25, %p26
      %p28 = scmp.ne.s32.totalorder %s19, %s20
      %p29 = scmp.eq.s32.totalorder %s14, 0
      %p30 = por %p28, %p29
      %p31 = scmp.ne.s32.totalorder %s19, %s20
      %p32 = scmp.eq.s32.totalorder %s15, 1
      %p33 = por %p31, %p32
      %p35 = scmp.ne.s32.totalorder %s20, %s34
      %p36 = scmp.eq.s32.totalorder %s15, 0
      %p37 = por %p35, %p36
      %s38 = ssub.s32 %s9, %s16
      %p39 = scmp.eq.s32.totalorder %s38, 0
      %s41 = sadd.s32 %s40, 1
      %s42 = scalar_select %p39, %s40, %s41
      %p45 = pneg %p39
      %p46 = scmp.eq.s32.totalorder %s9, 1
      %p47 = por %p45, %p46
      %p48 = scmp.ne.s32.totalorder %s40, %s43
      %p49 = scmp.eq.s32.totalorder %s9, 0
      %p50 = por %p48, %p49
      %p51 = scmp.ne.s32.totalorder %s40, %s43
      %p52 = scmp.eq.s32.totalorder %s14, 1
      %p53 = por %p51, %p52
      %p54 = scmp.ne.s32.totalorder %s43, %s44
      %p55 = scmp.eq.s32.totalorder %s14, 0
      %p56 = por %p54, %p55
      %p57 = scmp.ne.s32.totalorder %s43, %s44
      %p58 = scmp.eq.s32.totalorder %s15, 1
      %p59 = por %p57, %p58
      %p61 = scmp.ne.s32.totalorder %s44, %s60
      %p62 = scmp.eq.s32.totalorder %s15, 0
      %p63 = por %p61, %p62
      %s65 = sadd.s32 %s64, 1
      %p68 = scmp.eq.s32.totalorder %s9, 1
      %p69 = scmp.ne.s32.totalorder %s64, %s66
      %p70 = scmp.eq.s32.totalorder %s9, 0
      %p71 = por %p69, %p70
      %p72 = scmp.ne.s32.totalorder %s64, %s66
      %p73 = scmp.eq.s32.totalorder %s14, 1
      %p74 = por %p72, %p73
      %p75 = scmp.ne.s32.totalorder %s66, %s67
      %p76 = scmp.eq.s32.totalorder %s14, 0
      %p77 = por %p75, %p76
      %p78 = scmp.ne.s32.totalorder %s66, %s67
      %p79 = scmp.eq.s32.totalorder %s15, 1
      %p80 = por %p78, %p79
      %p82 = scmp.ne.s32.totalorder %s67, %s81
      %p83 = scmp.eq.s32.totalorder %s15, 0
      %p84 = por %p82, %p83
      %s85 = ssub.s32 %s9, %s16
      %p86 = scmp.eq.s32.totalorder %s85, 0
      %s88 = sadd.s32 %s87, 1
      %s89 = scalar_select %p86, %s87, %s88
      %p92 = pneg %p86
      %p93 = scmp.eq.s32.totalorder %s9, 1
      %p94 = por %p92, %p93
      %p95 = scmp.ne.s32.totalorder %s87, %s90
      %p96 = scmp.eq.s32.totalorder %s9, 0
      %p97 = por %p95, %p96
      %p98 = scmp.ne.s32.totalorder %s87, %s90
      %p99 = scmp.eq.s32.totalorder %s14, 1
      %p100 = por %p98, %p99
      %p101 = scmp.ne.s32.totalorder %s90, %s91
      %p102 = scmp.eq.s32.totalorder %s14, 0
      %p103 = por %p101, %p102
      %p104 = scmp.ne.s32.totalorder %s90, %s91
      %p105 = scmp.eq.s32.totalorder %s15, 1
      %p106 = por %p104, %p105
      %p108 = scmp.ne.s32.totalorder %s91, %s107
      %p109 = scmp.eq.s32.totalorder %s15, 0
      %p110 = por %p108, %p109
      %p111 = scmp.le.s32.totalorder 1, %s9
      %p112 = scmp.lt.s32.totalorder %s9, 3
      %p113 = pnand %p111, %p112
      %p114 = pneg %p113
      // Predicated region
      $region9: #{siamrpn_forward.5} parent=5 // pred_check
        _
      $region10: #{siamrpn_forward.5} parent=5 // pred_check_branch
        %116 = sbr.rel (%p113) target = $region12
      $region11: #{siamrpn_forward.5} parent=5 // pred_region
        %s117 = ssub.s32 %s9, 1
        // Predicated region
        $region13: #{siamrpn_forward.5} parent=11 // pred_check
          %p118 = pneg %p30
        $region14: #{siamrpn_forward.5} parent=11 // pred_check_branch
          %120 = sbr.rel (%p118) target = $region16
        $region15: #{siamrpn_forward.5} parent=11 // pred_region
          _
        $region16: #{siamrpn_forward.5} parent=11 // pred_fallthru
          _
        // Predicated region
        $region17: #{siamrpn_forward.5} parent=11 // pred_check
          %p121 = pneg %p77
        $region18: #{siamrpn_forward.5} parent=11 // pred_check_branch
          %123 = sbr.rel (%p121) target = $region20
        $region19: #{siamrpn_forward.5} parent=11 // pred_region
          _
        $region20: #{siamrpn_forward.5} parent=11 // pred_fallthru
          _
      $region12: #{siamrpn_forward.5} parent=5 // pred_fallthru
        _
      %p124 = scmp.lt.s32.totalorder %s9, 2
      // Predicated region
      $region21: #{siamrpn_forward.5} parent=5 // pred_check
        %p125 = pneg %p124
      $region22: #{siamrpn_forward.5} parent=5 // pred_check_branch
        %127 = sbr.rel (%p125) target = $region24
      $region23: #{siamrpn_forward.5} parent=5 // pred_region
        // Predicated region
        $region25: #{siamrpn_forward.5} parent=23 // pred_check
          %p128 = pneg %p50
        $region26: #{siamrpn_forward.5} parent=23 // pred_check_branch
          %130 = sbr.rel (%p128) target = $region28
        $region27: #{siamrpn_forward.5} parent=23 // pred_region
          %s131 = sand.u32 %s40, 1
          %s132 = sand.u32 %s40, 1
          %s133 = smul.addr %s132, 96
          %s134 = scalar_lea.vmem [#allocation2], %s133
          %s135 = smul.u32 6, %s9
          %s136 = smul.addr %s135, 4
          %s137 = scalar_lea.vmem %s1, %s136
          // Predicated region
          $region29: #{siamrpn_forward.5} parent=27 // pred_check
            _
          $region30: #{siamrpn_forward.5} parent=27 // pred_check_branch
            %139 = sbr.rel (0) target = $region32
          $region31: #{siamrpn_forward.5} parent=27 // pred_region
            // Predicated region
            $region33: #{siamrpn_forward.5} parent=31 // pred_check
              _
            $region34: #{siamrpn_forward.5} parent=31 // pred_check_branch
              %141 = sbr.rel (0) target = $region36
            $region35: #{siamrpn_forward.5} parent=31 // pred_region
              loop: start=0, step=1, limit=1
              $region37: #{siamrpn_forward.5} parent=35 // loop_pre_header
                _
              $region38: #{siamrpn_forward.5} parent=35 // loop_header
                %s143 = sphi 0, %s147
                %p144 = scmp.ge.s32.totalorder %s143, 1
                %s148 = sphi %s137, %s137
                %s149 = sphi %s134, %s134
              $region39: #{siamrpn_forward.5} parent=35 // loop_header_branch
                %146 = sbr.rel (%p144) target = $region43
              $region40: #{siamrpn_forward.5} parent=35 // loop_body
                %v150 = vld [vmem:[%s148] sm:$0xff]
                %151 = vst [vmem:[%s149] sm:$0xff] %v150
                %v152 = vld [vmem:[%s148 + $0x8] sm:$0xff]
                %153 = vst [vmem:[%s149 + $0x8] sm:$0xff] %v152
                %v154 = vld [vmem:[%s148 + $0x10] sm:$0xff]
                %155 = vst [vmem:[%s149 + $0x10] sm:$0xff] %v154
                %v156 = vld [vmem:[%s148 + $0x30] sm:$0xff]
                %157 = vst [vmem:[%s149 + $0x18] sm:$0xff] %v156
                %v158 = vld [vmem:[%s148 + $0x38] sm:$0xff]
                %159 = vst [vmem:[%s149 + $0x20] sm:$0xff] %v158
                %v160 = vld [vmem:[%s148 + $0x40] sm:$0xff]
                %161 = vst [vmem:[%s149 + $0x28] sm:$0xff] %v160
                %v162 = vld [vmem:[%s148 + $0x60] sm:$0xff]
                %163 = vst [vmem:[%s149 + $0x30] sm:$0xff] %v162
                %v164 = vld [vmem:[%s148 + $0x68] sm:$0xff]
                %165 = vst [vmem:[%s149 + $0x38] sm:$0xff] %v164
                %v166 = vld [vmem:[%s148 + $0x70] sm:$0xff]
                %167 = vst [vmem:[%s149 + $0x40] sm:$0xff] %v166
                %v168 = vld [vmem:[%s148 + $0x90] sm:$0xff]
                %169 = vst [vmem:[%s149 + $0x48] sm:$0xff] %v168
                %v170 = vld [vmem:[%s148 + $0x98] sm:$0xff]
                %171 = vst [vmem:[%s149 + $0x50] sm:$0xff] %v170
                %v172 = vld [vmem:[%s148 + $0xa0] sm:$0xff]
                %173 = vst [vmem:[%s149 + $0x58] sm:$0xff] %v172
              $region41: #{siamrpn_forward.5} parent=35 // loop_footer
                %s147 = sadd.s32 1, %s143
              $region42: #{siamrpn_forward.5} parent=35 // loop_footer_branch
                %142 = sbr.rel target = $region38
              $region43: #{siamrpn_forward.5} parent=35 // loop_exit
                _
            $region36: #{siamrpn_forward.5} parent=31 // pred_fallthru
              _
            // Predicated region
            $region44: #{siamrpn_forward.5} parent=31 // pred_check
              _
            $region45: #{siamrpn_forward.5} parent=31 // pred_check_branch
              %175 = sbr.rel target = $region47
            $region46: #{siamrpn_forward.5} parent=31 // pred_region
              _
            $region47: #{siamrpn_forward.5} parent=31 // pred_fallthru
              _
          $region32: #{siamrpn_forward.5} parent=27 // pred_fallthru
            _
          %176 = vnop
        $region28: #{siamrpn_forward.5} parent=23 // pred_fallthru
          _
      $region24: #{siamrpn_forward.5} parent=5 // pred_fallthru
        _
      %p177 = scmp.le.s32.totalorder 1, %s9
      %p178 = scmp.lt.s32.totalorder %s9, 3
      %p179 = pnand %p177, %p178
      %p180 = pneg %p179
      // Predicated region
      $region48: #{siamrpn_forward.5} parent=5 // pred_check
        _
      $region49: #{siamrpn_forward.5} parent=5 // pred_check_branch
        %182 = sbr.rel (%p179) target = $region51
      $region50: #{siamrpn_forward.5} parent=5 // pred_region
        %s183 = ssub.s32 %s9, 1
        %s184 = sand.u32 %s43, 1
        %s185 = sand.u32 %s43, 1
        %s186 = smul.addr %s185, 96
        %s187 = scalar_lea.vmem [#allocation2], %s186
        // Predicated region
        $region52: #{siamrpn_forward.5} parent=50 // pred_check
          %p188 = pneg %p56
        $region53: #{siamrpn_forward.5} parent=50 // pred_check_branch
          %190 = sbr.rel (%p188) target = $region55
        $region54: #{siamrpn_forward.5} parent=50 // pred_region
          _
        $region55: #{siamrpn_forward.5} parent=50 // pred_fallthru
          _
        %p191 = pneg %p30
        %p192 = pneg %p27
        %s193 = sand.u32 %s43, 1
        %s194 = sand.u32 %s43, 1
        %s195 = smul.addr %s194, 96
        %s196 = scalar_lea.vmem [#allocation2], %s195
        %p197 = pneg %p56
        %p198 = pneg %p53
        %p199 = pneg %p77
        %p200 = pneg %p74
        %p201 = pneg %p103
        %p202 = pneg %p100
        %s203 = smul.u32 6, %s14
        %p204 = scmp.lt.s32.totalorder %s203, 11
        %s205 = scalar_select %p204, %s203, 11
        %s206 = smul.addr %s205, 8
        %s207 = scalar_lea.vmem %s3, %s206
        %s208 = smul.u32 6, %s14
        %s209 = smul.u32 6, %s14
        %p210 = scmp.lt.s32.totalorder %s209, 11
        %s211 = scalar_select %p210, %s209, 11
        %s212 = smul.addr %s211, 8
        %s213 = scalar_lea.vmem %s3, %s212
        %s214 = smul.u32 6, %s14
        %v216 = vld [vmem:[%s0] sm:$0xf]
        %v217 = vld [vmem:[%s187] sm:$0xff]
        %v218 = vld [vmem:[%s187 + $0x8] sm:$0xff]
        %v219 = vld [vmem:[%s187 + $0x10] sm:$0xff]
        %v220 = vld [vmem:[%s187 + $0x18] sm:$0xff]
        %v221 = vld [vmem:[%s187 + $0x20] sm:$0xff]
        %v222 = vld [vmem:[%s187 + $0x28] sm:$0xff]
        %v223 = vld [vmem:[%s187 + $0x30] sm:$0xff]
        %v224 = vld [vmem:[%s187 + $0x38] sm:$0xff]
        %v225 = vld [vmem:[%s187 + $0x40] sm:$0xff]
        %v226 = vld [vmem:[%s187 + $0x48] sm:$0x33]
        %v227 = vld [vmem:[%s187 + $0x50] sm:$0x33]
        %v228 = vld [vmem:[%s187 + $0x58] sm:$0x33]
        %v229 = vld [vmem:[%s2] sm:$0xff]
        %231 = vset.pattern.permute.xlu0 0
        %232 = vperm.xlu0 %231, %v229
        %v233 = vpop.permute.xlu0 %232
        %v247 = vunpack.c.l.b16 %v217
        %v248 = vunpack.c.h.b16 %v217
        %v249 = vunpack.c.l.b16 %v218
        %v250 = vunpack.c.h.b16 %v218
        %v251 = vunpack.c.l.b16 %v219
        %v252 = vunpack.c.h.b16 %v219
        %v253 = vunpack.c.l.b16 %v220
        %v254 = vunpack.c.h.b16 %v220
        %v255 = vunpack.c.l.b16 %v221
        %v256 = vunpack.c.h.b16 %v221
        %v257 = vunpack.c.l.b16 %v222
        %v258 = vunpack.c.h.b16 %v222
        %v259 = vunpack.c.l.b16 %v223
        %v260 = vunpack.c.h.b16 %v223
        %v261 = vunpack.c.l.b16 %v224
        %v262 = vunpack.c.h.b16 %v224
        %v263 = vunpack.c.l.b16 %v225
        %v264 = vunpack.c.h.b16 %v225
        %v265 = vunpack.c.l.b16 %v226
        %v266 = vunpack.c.h.b16 %v226
        %v267 = vunpack.c.l.b16 %v227
        %v268 = vunpack.c.h.b16 %v227
        %v269 = vunpack.c.l.b16 %v228
        %v270 = vunpack.c.h.b16 %v228
        %v271 = vpack.c.b16 %v253, %v247
        %v272 = vpack.c.b16 %v254, %v248
        %v273 = vpack.c.b16 %v255, %v249
        %v274 = vpack.c.b16 %v256, %v250
        %v275 = vpack.c.b16 %v257, %v251
        %v276 = vpack.c.b16 %v258, %v252
        %v277 = vpack.c.b16 %v265, %v259
        %v278 = vpack.c.b16 %v266, %v260
        %v279 = vpack.c.b16 %v267, %v261
        %v280 = vpack.c.b16 %v268, %v262
        %v281 = vpack.c.b16 %v269, %v263
        %v282 = vpack.c.b16 %v270, %v264
        %vm289 = vcmask 220160
        %v291 = vsel %vm289, %v216, 0
        %vm293 = vcmask 1044480
        %vm294 = vcmask 1045504
        %v295 = vsel %vm293, 4294967295, 65535
        %v296 = vsel %vm294, %v295, 0
        %v298 = vand.u32 %v277, %v296
        %v301 = vand.u32 %v278, %v296
        %v304 = vand.u32 %v279, %v296
        %v307 = vand.u32 %v280, %v296
        %v310 = vand.u32 %v281, %v296
        %v313 = vand.u32 %v282, %v296
        %315 = vmatprep.subr.bf16.mxu0 0
        %316 = vmatpush1.bf16.msra.mxu0 0
        %317 = vmatprep.subr.bf16.mxu0 0
        %318 = vmatpush1.bf16.msra.mxu0 0
        %319 = vmatprep.subr.bf16.mxu0 0
        %320 = vmatpush1.bf16.msra.mxu0 0
        %321 = vmatprep.subr.bf16.mxu0 0
        %322 = vmatpush1.bf16.msra.mxu0 0
        %323 = vmatprep.subr.bf16.mxu0 0
        %324 = vmatpush1.bf16.msra.mxu0 0
        %325 = vmatprep.subr.bf16.mxu0 0
        %326 = vmatpush1.bf16.msra.mxu0 0
        %327 = vmatprep.subr.bf16.mxu0 %v301
        %328 = vmatpush1.bf16.msra.mxu0 %v298
        %329 = vmatprep.subr.bf16.mxu0 %v272
        %330 = vmatpush1.bf16.msra.mxu0 %v271
        %331 = vmatprep.subr.bf16.mxu0 0
        %332 = vmatpush2.bf16.msra.mxu0 0
        %333 = vmatprep.subr.bf16.mxu0 0
        %334 = vmatpush2.bf16.msra.mxu0 0
        %335 = vmatprep.subr.bf16.mxu0 0
        %336 = vmatpush2.bf16.msra.mxu0 0
        %337 = vmatprep.subr.bf16.mxu0 0
        %338 = vmatpush2.bf16.msra.mxu0 0
        %339 = vmatprep.subr.bf16.mxu0 0
        %340 = vmatpush2.bf16.msra.mxu0 0
        %341 = vmatprep.subr.bf16.mxu0 0
        %342 = vmatpush2.bf16.msra.mxu0 0
        %343 = vmatprep.subr.bf16.mxu0 0
        %344 = vmatpush2.bf16.msra.mxu0 0
        %345 = vmatprep.subr.bf16.mxu0 0
        %346 = vmatpush2.bf16.msra.mxu0 0
        %347 = vmatprep.mubr.bf16.mxu0 0
        %348 = vmatmul.mubr.bf16.gmra.mxu0 %v291
        %v349 = vpop.f32.mrf.mxu0
        %v350 = vadd.f32 %v233, %v349
        %v351 = vpop.f32.mrf.mxu0
        %v352 = vadd.f32 %v233, %v351
        %v353 = vpop.f32.mrf.mxu0
        %v354 = vpop.f32.mrf.mxu0
        %355 = vdwg.mxu0
        %356 = vmatprep.subr.bf16.mxu0 0
        %357 = vmatpush1.bf16.msra.mxu0 0
        %358 = vmatprep.subr.bf16.mxu0 0
        %359 = vmatpush1.bf16.msra.mxu0 0
        %360 = vmatprep.subr.bf16.mxu0 0
        %361 = vmatpush1.bf16.msra.mxu0 0
        %362 = vmatprep.subr.bf16.mxu0 0
        %363 = vmatpush1.bf16.msra.mxu0 0
        %364 = vmatprep.subr.bf16.mxu0 0
        %365 = vmatpush1.bf16.msra.mxu0 0
        %366 = vmatprep.subr.bf16.mxu0 0
        %367 = vmatpush1.bf16.msra.mxu0 0
        %368 = vmatprep.subr.bf16.mxu0 %v307
        %369 = vmatpush1.bf16.msra.mxu0 %v304
        %370 = vmatprep.subr.bf16.mxu0 %v274
        %371 = vmatpush1.bf16.msra.mxu0 %v273
        %372 = vmatprep.subr.bf16.mxu0 0
        %373 = vmatpush2.bf16.msra.mxu0 0
        %374 = vmatprep.subr.bf16.mxu0 0
        %375 = vmatpush2.bf16.msra.mxu0 0
        %376 = vmatprep.subr.bf16.mxu0 0
        %377 = vmatpush2.bf16.msra.mxu0 0
        %378 = vmatprep.subr.bf16.mxu0 0
        %379 = vmatpush2.bf16.msra.mxu0 0
        %380 = vmatprep.subr.bf16.mxu0 0
        %381 = vmatpush2.bf16.msra.mxu0 0
        %382 = vmatprep.subr.bf16.mxu0 0
        %383 = vmatpush2.bf16.msra.mxu0 0
        %384 = vmatprep.subr.bf16.mxu0 0
        %385 = vmatpush2.bf16.msra.mxu0 0
        %386 = vmatprep.subr.bf16.mxu0 0
        %387 = vmatpush2.bf16.msra.mxu0 0
        %388 = vmatprep.mubr.bf16.mxu0 0
        %389 = vmatmul.mubr.bf16.gmra.mxu0 %v291
        %v390 = vpop.f32.mrf.mxu0
        %v391 = vadd.f32 %v233, %v390
        %v392 = vpop.f32.mrf.mxu0
        %v393 = vadd.f32 %v233, %v392
        %v394 = vpop.f32.mrf.mxu0
        %v395 = vpop.f32.mrf.mxu0
        %396 = vdwg.mxu0
        %397 = vmatprep.subr.bf16.mxu0 0
        %398 = vmatpush1.bf16.msra.mxu0 0
        %399 = vmatprep.subr.bf16.mxu0 0
        %400 = vmatpush1.bf16.msra.mxu0 0
        %401 = vmatprep.subr.bf16.mxu0 0
        %402 = vmatpush1.bf16.msra.mxu0 0
        %403 = vmatprep.subr.bf16.mxu0 0
        %404 = vmatpush1.bf16.msra.mxu0 0
        %405 = vmatprep.subr.bf16.mxu0 0
        %406 = vmatpush1.bf16.msra.mxu0 0
        %407 = vmatprep.subr.bf16.mxu0 0
        %408 = vmatpush1.bf16.msra.mxu0 0
        %409 = vmatprep.subr.bf16.mxu0 %v313
        %410 = vmatpush1.bf16.msra.mxu0 %v310
        %411 = vmatprep.subr.bf16.mxu0 %v276
        %412 = vmatpush1.bf16.msra.mxu0 %v275
        %413 = vmatprep.subr.bf16.mxu0 0
        %414 = vmatpush2.bf16.msra.mxu0 0
        %415 = vmatprep.subr.bf16.mxu0 0
        %416 = vmatpush2.bf16.msra.mxu0 0
        %417 = vmatprep.subr.bf16.mxu0 0
        %418 = vmatpush2.bf16.msra.mxu0 0
        %419 = vmatprep.subr.bf16.mxu0 0
        %420 = vmatpush2.bf16.msra.mxu0 0
        %421 = vmatprep.subr.bf16.mxu0 0
        %422 = vmatpush2.bf16.msra.mxu0 0
        %423 = vmatprep.subr.bf16.mxu0 0
        %424 = vmatpush2.bf16.msra.mxu0 0
        %425 = vmatprep.subr.bf16.mxu0 0
        %426 = vmatpush2.bf16.msra.mxu0 0
        %427 = vmatprep.subr.bf16.mxu0 0
        %428 = vmatpush2.bf16.msra.mxu0 0
        %429 = vmatprep.mubr.bf16.mxu0 0
        %430 = vmatmul.mubr.bf16.gmra.mxu0 %v291
        %v431 = vpop.f32.mrf.mxu0
        %v432 = vadd.f32 %v233, %v431
        %v433 = vpop.f32.mrf.mxu0
        %v434 = vadd.f32 %v233, %v433
        %v435 = vpop.f32.mrf.mxu0
        %v436 = vpop.f32.mrf.mxu0
        %437 = vdwg.mxu0
        %v438 = vmax.f32 %v350, 0.0
        %v439 = vmax.f32 %v352, 0.0
        %v440 = vmax.f32 %v391, 0.0
        %v441 = vmax.f32 %v393, 0.0
        %v442 = vmax.f32 %v432, 0.0
        %v443 = vmax.f32 %v434, 0.0
        %444 = vst [vmem:[%s213] sm:$0xff] %v438
        %445 = vst [vmem:[%s213 + $0x8] sm:$0xff] %v439
        %446 = vst [vmem:[%s213 + $0x10] sm:$0xff] %v440
        %447 = vst [vmem:[%s213 + $0x18] sm:$0xff] %v441
        %448 = vst [vmem:[%s213 + $0x20] sm:$0xff] %v442
        %449 = vst [vmem:[%s213 + $0x28] sm:$0xff] %v443
        %s450 = smul.u32 6, %s14
        %p451 = scmp.lt.s32.totalorder %s450, 11
        %s452 = scalar_select %p451, %s450, 11
        %s453 = smul.addr %s452, 8
        %s454 = scalar_lea.vmem %s3, %s453
        // Predicated region
        $region56: #{siamrpn_forward.5} parent=50 // pred_check
          %p455 = pneg %p100
        $region57: #{siamrpn_forward.5} parent=50 // pred_check_branch
          %457 = sbr.rel (%p455) target = $region59
        $region58: #{siamrpn_forward.5} parent=50 // pred_region
          %s458 = smul.u32 6, %s14
        $region59: #{siamrpn_forward.5} parent=50 // pred_fallthru
          _
      $region51: #{siamrpn_forward.5} parent=5 // pred_fallthru
        _
      %p459 = scmp.le.s32.totalorder 2, %s9
      // Predicated region
      $region60: #{siamrpn_forward.5} parent=5 // pred_check
        %p460 = pneg %p459
      $region61: #{siamrpn_forward.5} parent=5 // pred_check_branch
        %462 = sbr.rel (%p460) target = $region63
      $region62: #{siamrpn_forward.5} parent=5 // pred_region
        %s463 = ssub.s32 %s9, 2
        // Predicated region
        $region64: #{siamrpn_forward.5} parent=62 // pred_check
          %p464 = pneg %p106
        $region65: #{siamrpn_forward.5} parent=62 // pred_check_branch
          %466 = sbr.rel (%p464) target = $region67
        $region66: #{siamrpn_forward.5} parent=62 // pred_region
          %s467 = smul.u32 6, %s15
          %p468 = scmp.lt.s32.totalorder %s467, 11
          %s469 = scalar_select %p468, %s467, 11
          %s470 = smul.addr %s469, 8
          %s471 = scalar_lea.vmem %s3, %s470
        $region67: #{siamrpn_forward.5} parent=62 // pred_fallthru
          _
      $region63: #{siamrpn_forward.5} parent=5 // pred_fallthru
        _
    $region6: #{siamrpn_forward.5} parent=1 // loop_footer
      %s13 = sadd.s32 1, %s9
    $region7: #{siamrpn_forward.5} parent=1 // loop_footer_branch
      %8 = sbr.rel target = $region3
    $region8: #{siamrpn_forward.5} parent=1 // loop_exit
      _

// kernel: siamrpn_forward.6
$region0: #{siamrpn_forward.6}
  #allocation0 [shape = 'u32[]', space=smem, size = 0x4, offset = 0x4, fixed_abs, tag = 'smem constant byte address 0x4 - core index']
  #allocation1 [shape = 'u32[144,128]{1,0:T(1,128)}', space=vmem, size = 0x12000, scoped, tag = 'internal scratch']
  %s0 = inlined_call_operand.vmem [shape: bf16[16,72], index: 0, kind: input, shape index: {}]
  %s1 = inlined_call_operand.vmem [shape: bf16[72,512], index: 1, kind: input, shape index: {}]
  %s2 = inlined_call_operand.vmem [shape: f32[16,1], index: 2, kind: input, shape index: {}]
  %s3 = inlined_call_operand.vmem [shape: f32[16,512], index: 3, kind: output, shape index: {}]
  %s4 = sld [smem:[#allocation0]]
  $region102: #{siamrpn_forward.6} parent=0
    _
  %s6 = ssub.s32 1, %s4
  %s7 = scalar_select 0, %s6, %s4
  $region1: #{siamrpn_forward.6} parent=0
    #allocation2 [shape = 'u8[73728]{0}', space=vmem, size = 0x12000, scoped, tag = 'input window, operand 1']
    #allocation3 [shape = 'u8[32768]{0}', space=vmem, size = 0x8000, scoped, tag = 'output window, operand 0']
    loop: start=0, step=1, limit=4
    $region2: #{siamrpn_forward.6} parent=1 // loop_pre_header
      _
    $region3: #{siamrpn_forward.6} parent=1 // loop_header
      %s9 = sphi 0, %s13
      %p10 = scmp.ge.s32.totalorder %s9, 4
      %s17 = sphi 0, %s17
      %s19 = sphi 0, %s17
      %s20 = sphi 0, %s19
      %s34 = sphi 0, %s20
      %s40 = sphi 0, %s42
      %s43 = sphi 0, %s40
      %s44 = sphi 0, %s43
      %s60 = sphi 0, %s44
      %s64 = sphi 0, %s64
      %s66 = sphi 0, %s64
      %s67 = sphi 0, %s66
      %s81 = sphi 0, %s67
      %s87 = sphi 0, %s89
      %s90 = sphi 0, %s87
      %s91 = sphi 0, %s90
      %s107 = sphi 0, %s91
    $region4: #{siamrpn_forward.6} parent=1 // loop_header_branch
      %12 = sbr.rel (%p10) target = $region8
    $region5: #{siamrpn_forward.6} parent=1 // loop_body
      %s14 = ssub.s32 %s9, 1
      %s15 = ssub.s32 %s9, 2
      %s16 = sadd.s32 %s9, 1
      %s18 = sadd.s32 %s17, 1
      %p21 = scmp.eq.s32.totalorder %s9, 1
      %p22 = scmp.ne.s32.totalorder %s17, %s19
      %p23 = scmp.eq.s32.totalorder %s9, 0
      %p24 = por %p22, %p23
      %p25 = scmp.ne.s32.totalorder %s17, %s19
      %p26 = scmp.eq.s32.totalorder %s14, 1
      %p27 = por %p25, %p26
      %p28 = scmp.ne.s32.totalorder %s19, %s20
      %p29 = scmp.eq.s32.totalorder %s14, 0
      %p30 = por %p28, %p29
      %p31 = scmp.ne.s32.totalorder %s19, %s20
      %p32 = scmp.eq.s32.totalorder %s15, 1
      %p33 = por %p31, %p32
      %p35 = scmp.ne.s32.totalorder %s20, %s34
      %p36 = scmp.eq.s32.totalorder %s15, 0
      %p37 = por %p35, %p36
      %s38 = ssub.s32 %s9, %s16
      %p39 = scmp.eq.s32.totalorder %s38, 0
      %s41 = sadd.s32 %s40, 1
      %s42 = scalar_select %p39, %s40, %s41
      %p45 = pneg %p39
      %p46 = scmp.eq.s32.totalorder %s9, 1
      %p47 = por %p45, %p46
      %p48 = scmp.ne.s32.totalorder %s40, %s43
      %p49 = scmp.eq.s32.totalorder %s9, 0
      %p50 = por %p48, %p49
      %p51 = scmp.ne.s32.totalorder %s40, %s43
      %p52 = scmp.eq.s32.totalorder %s14, 1
      %p53 = por %p51, %p52
      %p54 = scmp.ne.s32.totalorder %s43, %s44
      %p55 = scmp.eq.s32.totalorder %s14, 0
      %p56 = por %p54, %p55
      %p57 = scmp.ne.s32.totalorder %s43, %s44
      %p58 = scmp.eq.s32.totalorder %s15, 1
      %p59 = por %p57, %p58
      %p61 = scmp.ne.s32.totalorder %s44, %s60
      %p62 = scmp.eq.s32.totalorder %s15, 0
      %p63 = por %p61, %p62
      %s65 = sadd.s32 %s64, 1
      %p68 = scmp.eq.s32.totalorder %s9, 1
      %p69 = scmp.ne.s32.totalorder %s64, %s66
      %p70 = scmp.eq.s32.totalorder %s9, 0
      %p71 = por %p69, %p70
      %p72 = scmp.ne.s32.totalorder %s64, %s66
      %p73 = scmp.eq.s32.totalorder %s14, 1
      %p74 = por %p72, %p73
      %p75 = scmp.ne.s32.totalorder %s66, %s67
      %p76 = scmp.eq.s32.totalorder %s14, 0
      %p77 = por %p75, %p76
      %p78 = scmp.ne.s32.totalorder %s66, %s67
      %p79 = scmp.eq.s32.totalorder %s15, 1
      %p80 = por %p78, %p79
      %p82 = scmp.ne.s32.totalorder %s67, %s81
      %p83 = scmp.eq.s32.totalorder %s15, 0
      %p84 = por %p82, %p83
      %s85 = ssub.s32 %s9, %s16
      %p86 = scmp.eq.s32.totalorder %s85, 0
      %s88 = sadd.s32 %s87, 1
      %s89 = scalar_select %p86, %s87, %s88
      %p92 = pneg %p86
      %p93 = scmp.eq.s32.totalorder %s9, 1
      %p94 = por %p92, %p93
      %p95 = scmp.ne.s32.totalorder %s87, %s90
      %p96 = scmp.eq.s32.totalorder %s9, 0
      %p97 = por %p95, %p96
      %p98 = scmp.ne.s32.totalorder %s87, %s90
      %p99 = scmp.eq.s32.totalorder %s14, 1
      %p100 = por %p98, %p99
      %p101 = scmp.ne.s32.totalorder %s90, %s91
      %p102 = scmp.eq.s32.totalorder %s14, 0
      %p103 = por %p101, %p102
      %p104 = scmp.ne.s32.totalorder %s90, %s91
      %p105 = scmp.eq.s32.totalorder %s15, 1
      %p106 = por %p104, %p105
      %p108 = scmp.ne.s32.totalorder %s91, %s107
      %p109 = scmp.eq.s32.totalorder %s15, 0
      %p110 = por %p108, %p109
      %p111 = scmp.le.s32.totalorder 1, %s9
      %p112 = scmp.lt.s32.totalorder %s9, 3
      %p113 = pnand %p111, %p112
      %p114 = pneg %p113
      // Predicated region
      $region9: #{siamrpn_forward.6} parent=5 // pred_check
        _
      $region10: #{siamrpn_forward.6} parent=5 // pred_check_branch
        %116 = sbr.rel (%p113) target = $region12
      $region11: #{siamrpn_forward.6} parent=5 // pred_region
        %s117 = ssub.s32 %s9, 1
        // Predicated region
        $region13: #{siamrpn_forward.6} parent=11 // pred_check
          %p118 = pneg %p30
        $region14: #{siamrpn_forward.6} parent=11 // pred_check_branch
          %120 = sbr.rel (%p118) target = $region16
        $region15: #{siamrpn_forward.6} parent=11 // pred_region
          _
        $region16: #{siamrpn_forward.6} parent=11 // pred_fallthru
          _
        // Predicated region
        $region17: #{siamrpn_forward.6} parent=11 // pred_check
          %p121 = pneg %p77
        $region18: #{siamrpn_forward.6} parent=11 // pred_check_branch
          %123 = sbr.rel (%p121) target = $region20
        $region19: #{siamrpn_forward.6} parent=11 // pred_region
          _
        $region20: #{siamrpn_forward.6} parent=11 // pred_fallthru
          _
      $region12: #{siamrpn_forward.6} parent=5 // pred_fallthru
        _
      %p124 = scmp.lt.s32.totalorder %s9, 2
      // Predicated region
      $region21: #{siamrpn_forward.6} parent=5 // pred_check
        %p125 = pneg %p124
      $region22: #{siamrpn_forward.6} parent=5 // pred_check_branch
        %127 = sbr.rel (%p125) target = $region24
      $region23: #{siamrpn_forward.6} parent=5 // pred_region
        // Predicated region
        $region25: #{siamrpn_forward.6} parent=23 // pred_check
          %p128 = pneg %p50
        $region26: #{siamrpn_forward.6} parent=23 // pred_check_branch
          %130 = sbr.rel (%p128) target = $region28
        $region27: #{siamrpn_forward.6} parent=23 // pred_region
          %s131 = sand.u32 %s40, 1
          %s132 = sand.u32 %s40, 1
          %s133 = smul.addr %s132, 72
          %s134 = scalar_lea.vmem [#allocation2], %s133
          %s135 = smul.u32 2, %s9
          %s136 = smul.addr %s135, 4
          %s137 = scalar_lea.vmem %s1, %s136
          // Predicated region
          $region29: #{siamrpn_forward.6} parent=27 // pred_check
            _
          $region30: #{siamrpn_forward.6} parent=27 // pred_check_branch
            %139 = sbr.rel (0) target = $region32
          $region31: #{siamrpn_forward.6} parent=27 // pred_region
            // Predicated region
            $region33: #{siamrpn_forward.6} parent=31 // pred_check
              _
            $region34: #{siamrpn_forward.6} parent=31 // pred_check_branch
              %141 = sbr.rel (0) target = $region36
            $region35: #{siamrpn_forward.6} parent=31 // pred_region
              // Predicated region
              $region48: #{siamrpn_forward.6} parent=35 // pred_check
                _
              $region49: #{siamrpn_forward.6} parent=35 // pred_check_branch
                %173 = sbr.rel (0) target = $region51
              $region50: #{siamrpn_forward.6} parent=35 // pred_region
                loop: start=0, step=1, limit=1
                $region52: #{siamrpn_forward.6} parent=50 // loop_pre_header
                  _
                $region53: #{siamrpn_forward.6} parent=50 // loop_header
                  %s175 = sphi 0, %s179
                  %p176 = scmp.ge.s32.totalorder %s175, 1
                  %s180 = sphi %s137, %s137
                  %s181 = sphi %s134, %s134
                $region54: #{siamrpn_forward.6} parent=50 // loop_header_branch
                  %178 = sbr.rel (%p176) target = $region58
                $region55: #{siamrpn_forward.6} parent=50 // loop_body
                  %v182 = vld [vmem:[%s180] sm:$0xff]
                  %183 = vst [vmem:[%s181] sm:$0xff] %v182
                  %v184 = vld [vmem:[%s180 + $0x10] sm:$0xff]
                  %185 = vst [vmem:[%s181 + $0x8] sm:$0xff] %v184
                  %v186 = vld [vmem:[%s180 + $0x20] sm:$0xff]
                  %187 = vst [vmem:[%s181 + $0x10] sm:$0xff] %v186
                  %v188 = vld [vmem:[%s180 + $0x30] sm:$0xff]
                  %189 = vst [vmem:[%s181 + $0x18] sm:$0xff] %v188
                  %v190 = vld [vmem:[%s180 + $0x40] sm:$0xff]
                  %191 = vst [vmem:[%s181 + $0x20] sm:$0xff] %v190
                  %v192 = vld [vmem:[%s180 + $0x50] sm:$0xff]
                  %193 = vst [vmem:[%s181 + $0x28] sm:$0xff] %v192
                  %v194 = vld [vmem:[%s180 + $0x60] sm:$0xff]
                  %195 = vst [vmem:[%s181 + $0x30] sm:$0xff] %v194
                  %v196 = vld [vmem:[%s180 + $0x70] sm:$0xff]
                  %197 = vst [vmem:[%s181 + $0x38] sm:$0xff] %v196
                  %v198 = vld [vmem:[%s180 + $0x80] sm:$0xff]
                  %199 = vst [vmem:[%s181 + $0x40] sm:$0xff] %v198
                $region56: #{siamrpn_forward.6} parent=50 // loop_footer
                  %s179 = sadd.s32 1, %s175
                $region57: #{siamrpn_forward.6} parent=50 // loop_footer_branch
                  %174 = sbr.rel target = $region53
                $region58: #{siamrpn_forward.6} parent=50 // loop_exit
                  _
              $region51: #{siamrpn_forward.6} parent=35 // pred_fallthru
                _
              // Predicated region
              $region59: #{siamrpn_forward.6} parent=35 // pred_check
                _
              $region60: #{siamrpn_forward.6} parent=35 // pred_check_branch
                %201 = sbr.rel target = $region62
              $region61: #{siamrpn_forward.6} parent=35 // pred_region
                _
              $region62: #{siamrpn_forward.6} parent=35 // pred_fallthru
                _
            $region36: #{siamrpn_forward.6} parent=31 // pred_fallthru
              _
            // Predicated region
            $region37: #{siamrpn_forward.6} parent=31 // pred_check
              _
            $region38: #{siamrpn_forward.6} parent=31 // pred_check_branch
              %143 = sbr.rel target = $region40
            $region39: #{siamrpn_forward.6} parent=31 // pred_region
              %s145 = ssub.s32 256, 1
              loop: start=0, step=1, limit=1
              $region41: #{siamrpn_forward.6} parent=39 // loop_pre_header
                _
              $region42: #{siamrpn_forward.6} parent=39 // loop_header
                %s147 = sphi 0, %s151
                %p148 = scmp.ge.s32.totalorder %s147, 1
                %s152 = sphi %s137, %s137
                %s153 = sphi %s134, %s134
              $region43: #{siamrpn_forward.6} parent=39 // loop_header_branch
                %150 = sbr.rel (%p148) target = $region47
              $region44: #{siamrpn_forward.6} parent=39 // loop_body
                %v154 = vld [vmem:[%s152] sm:%s145]
                %155 = vst [vmem:[%s153] sm:%s145] %v154
                %v156 = vld [vmem:[%s152 + $0x10] sm:%s145]
                %157 = vst [vmem:[%s153 + $0x8] sm:%s145] %v156
                %v158 = vld [vmem:[%s152 + $0x20] sm:%s145]
                %159 = vst [vmem:[%s153 + $0x10] sm:%s145] %v158
                %v160 = vld [vmem:[%s152 + $0x30] sm:%s145]
                %161 = vst [vmem:[%s153 + $0x18] sm:%s145] %v160
                %v162 = vld [vmem:[%s152 + $0x40] sm:%s145]
                %163 = vst [vmem:[%s153 + $0x20] sm:%s145] %v162
                %v164 = vld [vmem:[%s152 + $0x50] sm:%s145]
                %165 = vst [vmem:[%s153 + $0x28] sm:%s145] %v164
                %v166 = vld [vmem:[%s152 + $0x60] sm:%s145]
                %167 = vst [vmem:[%s153 + $0x30] sm:%s145] %v166
                %v168 = vld [vmem:[%s152 + $0x70] sm:%s145]
                %169 = vst [vmem:[%s153 + $0x38] sm:%s145] %v168
                %v170 = vld [vmem:[%s152 + $0x80] sm:%s145]
                %171 = vst [vmem:[%s153 + $0x40] sm:%s145] %v170
              $region45: #{siamrpn_forward.6} parent=39 // loop_footer
                %s151 = sadd.s32 1, %s147
              $region46: #{siamrpn_forward.6} parent=39 // loop_footer_branch
                %146 = sbr.rel target = $region42
              $region47: #{siamrpn_forward.6} parent=39 // loop_exit
                _
            $region40: #{siamrpn_forward.6} parent=31 // pred_fallthru
              _
          $region32: #{siamrpn_forward.6} parent=27 // pred_fallthru
            _
          %202 = vnop
        $region28: #{siamrpn_forward.6} parent=23 // pred_fallthru
          _
      $region24: #{siamrpn_forward.6} parent=5 // pred_fallthru
        _
      %p203 = scmp.le.s32.totalorder 1, %s9
      %p204 = scmp.lt.s32.totalorder %s9, 3
      %p205 = pnand %p203, %p204
      %p206 = pneg %p205
      // Predicated region
      $region63: #{siamrpn_forward.6} parent=5 // pred_check
        _
      $region64: #{siamrpn_forward.6} parent=5 // pred_check_branch
        %208 = sbr.rel (%p205) target = $region66
      $region65: #{siamrpn_forward.6} parent=5 // pred_region
        %s209 = ssub.s32 %s9, 1
        %s210 = sand.u32 %s43, 1
        %s211 = sand.u32 %s43, 1
        %s212 = smul.addr %s211, 72
        %s213 = scalar_lea.vmem [#allocation2], %s212
        // Predicated region
        $region67: #{siamrpn_forward.6} parent=65 // pred_check
          %p214 = pneg %p56
        $region68: #{siamrpn_forward.6} parent=65 // pred_check_branch
          %216 = sbr.rel (%p214) target = $region70
        $region69: #{siamrpn_forward.6} parent=65 // pred_region
          _
        $region70: #{siamrpn_forward.6} parent=65 // pred_fallthru
          _
        %p217 = pneg %p30
        %p218 = pneg %p27
        %s219 = sand.u32 %s43, 1
        %s220 = sand.u32 %s43, 1
        %s221 = smul.addr %s220, 72
        %s222 = scalar_lea.vmem [#allocation2], %s221
        %p223 = pneg %p56
        %p224 = pneg %p53
        %p225 = pneg %p77
        %p226 = pneg %p74
        %p227 = pneg %p103
        %p228 = pneg %p100
        %s229 = sand.u32 %s90, 1
        %s230 = sand.u32 %s90, 1
        %s231 = smul.addr %s230, 32
        %s232 = scalar_lea.vmem [#allocation3], %s231
        %s233 = smul.u32 2, %s14
        %s234 = smul.u32 2, %s14
        %v236 = vld [vmem:[%s0] sm:$0xf]
        %v237 = vld [vmem:[%s0 + $0x4] sm:$0xf]
        %v238 = vld [vmem:[%s213] sm:$0xff]
        %v239 = vld [vmem:[%s213 + $0x8] sm:$0xff]
        %v240 = vld [vmem:[%s213 + $0x10] sm:$0xff]
        %v241 = vld [vmem:[%s213 + $0x18] sm:$0xff]
        %v242 = vld [vmem:[%s213 + $0x20] sm:$0xff]
        %v243 = vld [vmem:[%s213 + $0x28] sm:$0xff]
        %v244 = vld [vmem:[%s213 + $0x30] sm:$0xff]
        %v245 = vld [vmem:[%s213 + $0x38] sm:$0xff]
        %v246 = vld [vmem:[%s213 + $0x40] sm:$0xff]
        %v247 = vld [vmem:[%s2] sm:$0xff]
        %v248 = vld [vmem:[%s2 + $0x8] sm:$0xff]
        %250 = vset.pattern.permute.xlu0 0
        %251 = vperm.xlu0 %250, %v247
        %v252 = vpop.permute.xlu0 %251
        %255 = vset.pattern.permute.xlu0 0
        %256 = vperm.xlu0 %255, %v248
        %v257 = vpop.permute.xlu0 %256
        %v261 = vunpack.c.l.b16 %v236
        %v262 = vunpack.c.l.b16 %v237
        %v263 = vpack.c.b16 %v262, %v261
        %v273 = vunpack.c.l.b16 %v238
        %v274 = vunpack.c.h.b16 %v238
        %v275 = vunpack.c.l.b16 %v239
        %v276 = vunpack.c.h.b16 %v239
        %v277 = vunpack.c.l.b16 %v240
        %v278 = vunpack.c.h.b16 %v240
        %v279 = vunpack.c.l.b16 %v241
        %v280 = vunpack.c.h.b16 %v241
        %v281 = vunpack.c.l.b16 %v242
        %v282 = vunpack.c.h.b16 %v242
        %v283 = vunpack.c.l.b16 %v243
        %v284 = vunpack.c.h.b16 %v243
        %v285 = vunpack.c.l.b16 %v244
        %v286 = vunpack.c.h.b16 %v244
        %v287 = vunpack.c.l.b16 %v245
        %v288 = vunpack.c.h.b16 %v245
        %v289 = vunpack.c.l.b16 %v246
        %v290 = vunpack.c.h.b16 %v246
        %v291 = vpack.c.b16 %v275, %v273
        %v292 = vpack.c.b16 %v276, %v274
        %v293 = vpack.c.b16 %v279, %v277
        %v294 = vpack.c.b16 %v280, %v278
        %v295 = vpack.c.b16 %v283, %v281
        %v296 = vpack.c.b16 %v284, %v282
        %v297 = vpack.c.b16 %v287, %v285
        %v298 = vpack.c.b16 %v288, %v286
        %v299 = vpack.c.b16 %v289, %v289
        %v300 = vpack.c.b16 %v290, %v290
        %vm309 = vcmask 588800
        %v311 = vsel %vm309, %v263, 0
        %vm313 = vcmask 1043456
        %v315 = vsel %vm313, %v299, 0
        %v318 = vsel %vm313, %v300, 0
        %320 = vmatprep.subr.bf16.mxu0 0
        %321 = vmatpush1.bf16.msra.mxu0 0
        %322 = vmatprep.subr.bf16.mxu0 0
        %323 = vmatpush1.bf16.msra.mxu0 0
        %324 = vmatprep.subr.bf16.mxu0 0
        %325 = vmatpush1.bf16.msra.mxu0 0
        %326 = vmatprep.subr.bf16.mxu0 %v318
        %327 = vmatpush1.bf16.msra.mxu0 %v315
        %328 = vmatprep.subr.bf16.mxu0 %v298
        %329 = vmatpush1.bf16.msra.mxu0 %v297
        %330 = vmatprep.subr.bf16.mxu0 %v296
        %331 = vmatpush1.bf16.msra.mxu0 %v295
        %332 = vmatprep.subr.bf16.mxu0 %v294
        %333 = vmatpush1.bf16.msra.mxu0 %v293
        %334 = vmatprep.subr.bf16.mxu0 %v292
        %335 = vmatpush1.bf16.msra.mxu0 %v291
        %336 = vmatprep.subr.bf16.mxu0 0
        %337 = vmatpush2.bf16.msra.mxu0 0
        %338 = vmatprep.subr.bf16.mxu0 0
        %339 = vmatpush2.bf16.msra.mxu0 0
        %340 = vmatprep.subr.bf16.mxu0 0
        %341 = vmatpush2.bf16.msra.mxu0 0
        %342 = vmatprep.subr.bf16.mxu0 0
        %343 = vmatpush2.bf16.msra.mxu0 0
        %344 = vmatprep.subr.bf16.mxu0 0
        %345 = vmatpush2.bf16.msra.mxu0 0
        %346 = vmatprep.subr.bf16.mxu0 0
        %347 = vmatpush2.bf16.msra.mxu0 0
        %348 = vmatprep.subr.bf16.mxu0 0
        %349 = vmatpush2.bf16.msra.mxu0 0
        %350 = vmatprep.subr.bf16.mxu0 0
        %351 = vmatpush2.bf16.msra.mxu0 0
        %352 = vmatprep.mubr.bf16.mxu0 0
        %353 = vmatmul.mubr.bf16.gmra.mxu0 %v311
        %v354 = vpop.f32.mrf.mxu0
        %v355 = vadd.f32 %v252, %v354
        %v356 = vpop.f32.mrf.mxu0
        %v357 = vadd.f32 %v252, %v356
        %v358 = vpop.f32.mrf.mxu0
        %v359 = vadd.f32 %v257, %v358
        %v360 = vpop.f32.mrf.mxu0
        %v361 = vadd.f32 %v257, %v360
        %362 = vdwg.mxu0
        %v363 = vmax.f32 %v355, 0.0
        %v364 = vmax.f32 %v357, 0.0
        %v365 = vmax.f32 %v359, 0.0
        %v366 = vmax.f32 %v361, 0.0
        %367 = vst [vmem:[%s232] sm:$0xff] %v363
        %368 = vst [vmem:[%s232 + $0x8] sm:$0xff] %v364
        %369 = vst [vmem:[%s232 + $0x10] sm:$0xff] %v365
        %370 = vst [vmem:[%s232 + $0x18] sm:$0xff] %v366
        %s371 = sand.u32 %s90, 1
        %s372 = sand.u32 %s90, 1
        %s373 = smul.addr %s372, 32
        %s374 = scalar_lea.vmem [#allocation3], %s373
        // Predicated region
        $region71: #{siamrpn_forward.6} parent=65 // pred_check
          %p375 = pneg %p100
        $region72: #{siamrpn_forward.6} parent=65 // pred_check_branch
          %377 = sbr.rel (%p375) target = $region74
        $region73: #{siamrpn_forward.6} parent=65 // pred_region
          %s378 = smul.u32 2, %s14
          %s379 = smul.addr %s378, 8
          %s380 = scalar_lea.vmem %s3, %s379
          // Predicated region
          $region75: #{siamrpn_forward.6} parent=73 // pred_check
            _
          $region76: #{siamrpn_forward.6} parent=73 // pred_check_branch
            %382 = sbr.rel (0) target = $region78
          $region77: #{siamrpn_forward.6} parent=73 // pred_region
            // Predicated region
            $region79: #{siamrpn_forward.6} parent=77 // pred_check
              _
            $region80: #{siamrpn_forward.6} parent=77 // pred_check_branch
              %384 = sbr.rel (0) target = $region82
            $region81: #{siamrpn_forward.6} parent=77 // pred_region
              loop: start=0, step=1, limit=1
              $region83: #{siamrpn_forward.6} parent=81 // loop_pre_header
                _
              $region84: #{siamrpn_forward.6} parent=81 // loop_header
                %s386 = sphi 0, %s390
                %p387 = scmp.ge.s32.totalorder %s386, 1
                %s391 = sphi %s374, %s374
                %s392 = sphi %s380, %s380
              $region85: #{siamrpn_forward.6} parent=81 // loop_header_branch
                %389 = sbr.rel (%p387) target = $region89
              $region86: #{siamrpn_forward.6} parent=81 // loop_body
                %v393 = vld [vmem:[%s391] sm:$0xff]
                %394 = vst [vmem:[%s392] sm:$0xff] %v393
                %v395 = vld [vmem:[%s391 + $0x8] sm:$0xff]
                %396 = vst [vmem:[%s392 + $0x8] sm:$0xff] %v395
                %v397 = vld [vmem:[%s391 + $0x10] sm:$0xff]
                %398 = vst [vmem:[%s392 + $0x20] sm:$0xff] %v397
                %v399 = vld [vmem:[%s391 + $0x18] sm:$0xff]
                %400 = vst [vmem:[%s392 + $0x28] sm:$0xff] %v399
              $region87: #{siamrpn_forward.6} parent=81 // loop_footer
                %s390 = sadd.s32 1, %s386
              $region88: #{siamrpn_forward.6} parent=81 // loop_footer_branch
                %385 = sbr.rel target = $region84
              $region89: #{siamrpn_forward.6} parent=81 // loop_exit
                _
            $region82: #{siamrpn_forward.6} parent=77 // pred_fallthru
              _
            // Predicated region
            $region90: #{siamrpn_forward.6} parent=77 // pred_check
              _
            $region91: #{siamrpn_forward.6} parent=77 // pred_check_branch
              %402 = sbr.rel target = $region93
            $region92: #{siamrpn_forward.6} parent=77 // pred_region
              _
            $region93: #{siamrpn_forward.6} parent=77 // pred_fallthru
              _
          $region78: #{siamrpn_forward.6} parent=73 // pred_fallthru
            _
          %403 = vnop
        $region74: #{siamrpn_forward.6} parent=65 // pred_fallthru
          _
      $region66: #{siamrpn_forward.6} parent=5 // pred_fallthru
        _
      %p404 = scmp.le.s32.totalorder 2, %s9
      // Predicated region
      $region94: #{siamrpn_forward.6} parent=5 // pred_check
        %p405 = pneg %p404
      $region95: #{siamrpn_forward.6} parent=5 // pred_check_branch
        %407 = sbr.rel (%p405) target = $region97
      $region96: #{siamrpn_forward.6} parent=5 // pred_region
        %s408 = ssub.s32 %s9, 2
        // Predicated region
        $region98: #{siamrpn_forward.6} parent=96 // pred_check
          %p409 = pneg %p106
        $region99: #{siamrpn_forward.6} parent=96 // pred_check_branch
          %411 = sbr.rel (%p409) target = $region101
        $region100: #{siamrpn_forward.6} parent=96 // pred_region
          %s412 = sand.u32 %s91, 1
          %s413 = sand.u32 %s91, 1
          %s414 = smul.addr %s413, 32
          %s415 = scalar_lea.vmem [#allocation3], %s414
        $region101: #{siamrpn_forward.6} parent=96 // pred_fallthru
          _
      $region97: #{siamrpn_forward.6} parent=5 // pred_fallthru
        _
    $region6: #{siamrpn_forward.6} parent=1 // loop_footer
      %s13 = sadd.s32 1, %s9
    $region7: #{siamrpn_forward.6} parent=1 // loop_footer_branch
      %8 = sbr.rel target = $region3
    $region8: #{siamrpn_forward.6} parent=1 // loop_exit
      _

// kernel: siamrpn_forward.7
$region0: #{siamrpn_forward.7}
  #allocation0 [shape = 'u32[]', space=smem, size = 0x4, offset = 0x4, fixed_abs, tag = 'smem constant byte address 0x4 - core index']
  #allocation1 [shape = 'u32[144,128]{1,0:T(1,128)}', space=vmem, size = 0x12000, scoped, tag = 'internal scratch']
  %s0 = inlined_call_operand.vmem [shape: bf16[16,144], index: 0, kind: input, shape index: {}]
  %s1 = inlined_call_operand.vmem [shape: bf16[144,68], index: 1, kind: input, shape index: {}]
  %s2 = inlined_call_operand.vmem [shape: f32[16,1], index: 2, kind: input, shape index: {}]
  %s3 = inlined_call_operand.vmem [shape: f32[16,68], index: 3, kind: output, shape index: {}]
  %s4 = sld [smem:[#allocation0]]
  $region22: #{siamrpn_forward.7} parent=0
    _
  %s6 = ssub.s32 1, %s4
  %s7 = scalar_select 0, %s6, %s4
  // Predicated region
  $region2: #{siamrpn_forward.7} parent=0 // pred_check
    _
  $region3: #{siamrpn_forward.7} parent=0 // pred_check_branch
    %9 = sbr.rel (0) target = $region5
  $region4: #{siamrpn_forward.7} parent=0 // pred_region
    _
  $region5: #{siamrpn_forward.7} parent=0 // pred_fallthru
    _
  // Predicated region
  $region6: #{siamrpn_forward.7} parent=0 // pred_check
    _
  $region7: #{siamrpn_forward.7} parent=0 // pred_check_branch
    %11 = sbr.rel (0) target = $region9
  $region8: #{siamrpn_forward.7} parent=0 // pred_region
    _
  $region9: #{siamrpn_forward.7} parent=0 // pred_fallthru
    _
  // Predicated region
  $region10: #{siamrpn_forward.7} parent=0 // pred_check
    _
  $region11: #{siamrpn_forward.7} parent=0 // pred_check_branch
    %13 = sbr.rel (0) target = $region13
  $region12: #{siamrpn_forward.7} parent=0 // pred_region
    _
  $region13: #{siamrpn_forward.7} parent=0 // pred_fallthru
    _
  %v15 = vld [vmem:[%s0] sm:$0xff]
  %v16 = vld [vmem:[%s0 + $0x8] sm:$0xff]
  %v17 = vld [vmem:[%s1] sm:$0xf]
  %v18 = vld [vmem:[%s1 + $0x4] sm:$0xf]
  %v19 = vld [vmem:[%s1 + $0x8] sm:$0xf]
  %v20 = vld [vmem:[%s1 + $0xc] sm:$0xf]
  %v21 = vld [vmem:[%s1 + $0x10] sm:$0xf]
  %v22 = vld [vmem:[%s1 + $0x14] sm:$0xf]
  %v23 = vld [vmem:[%s1 + $0x18] sm:$0xf]
  %v24 = vld [vmem:[%s1 + $0x1c] sm:$0xf]
  %v25 = vld [vmem:[%s1 + $0x20] sm:$0xf]
  %v26 = vld [vmem:[%s1 + $0x24] sm:$0xf]
  %v27 = vld [vmem:[%s1 + $0x28] sm:$0xf]
  %v28 = vld [vmem:[%s1 + $0x2c] sm:$0xf]
  %v29 = vld [vmem:[%s1 + $0x30] sm:$0xf]
  %v30 = vld [vmem:[%s1 + $0x34] sm:$0xf]
  %v31 = vld [vmem:[%s1 + $0x38] sm:$0xf]
  %v32 = vld [vmem:[%s1 + $0x3c] sm:$0xf]
  %v33 = vld [vmem:[%s1 + $0x40] sm:$0xf]
  %v34 = vld [vmem:[%s1 + $0x44] sm:$0xf]
  %v35 = vld [vmem:[%s2] sm:$0xff]
  %v36 = vld [vmem:[%s2 + $0x8] sm:$0xff]
  %38 = vset.pattern.permute.xlu0 0
  %39 = vperm.xlu0 %38, %v35
  %v40 = vpop.permute.xlu0 %39
  %43 = vset.pattern.permute.xlu0 0
  %44 = vperm.xlu0 %43, %v36
  %v45 = vpop.permute.xlu0 %44
  %v49 = vunpack.c.l.b16 %v15
  %v50 = vunpack.c.h.b16 %v15
  %v51 = vunpack.c.l.b16 %v16
  %v52 = vunpack.c.h.b16 %v16
  %v53 = vpack.c.b16 %v51, %v49
  %v54 = vpack.c.b16 %v52, %v50
  %v74 = vunpack.c.l.b16 %v17
  %v75 = vunpack.c.l.b16 %v18
  %v76 = vunpack.c.l.b16 %v19
  %v77 = vunpack.c.l.b16 %v20
  %v78 = vunpack.c.l.b16 %v21
  %v79 = vunpack.c.l.b16 %v22
  %v80 = vunpack.c.l.b16 %v23
  %v81 = vunpack.c.l.b16 %v24
  %v82 = vunpack.c.l.b16 %v25
  %v83 = vunpack.c.l.b16 %v26
  %v84 = vunpack.c.l.b16 %v27
  %v85 = vunpack.c.l.b16 %v28
  %v86 = vunpack.c.l.b16 %v29
  %v87 = vunpack.c.l.b16 %v30
  %v88 = vunpack.c.l.b16 %v31
  %v89 = vunpack.c.l.b16 %v32
  %v90 = vunpack.c.l.b16 %v33
  %v91 = vunpack.c.l.b16 %v34
  %v92 = vpack.c.b16 %v75, %v74
  %v93 = vpack.c.b16 %v77, %v76
  %v94 = vpack.c.b16 %v79, %v78
  %v95 = vpack.c.b16 %v81, %v80
  %v96 = vpack.c.b16 %v83, %v82
  %v97 = vpack.c.b16 %v85, %v84
  %v98 = vpack.c.b16 %v87, %v86
  %v99 = vpack.c.b16 %v89, %v88
  %v100 = vpack.c.b16 %v91, %v90
  %vm110 = vcmask 130048
  %v112 = vsel %vm110, %v54, 0
  %114 = vmatprep.subr.bf16.mxu0 0
  %115 = vmatpush1.bf16.msra.mxu0 %v99
  %116 = vmatprep.subr.bf16.mxu0 0
  %117 = vmatpush1.bf16.msra.mxu0 %v98
  %118 = vmatprep.subr.bf16.mxu0 0
  %119 = vmatpush1.bf16.msra.mxu0 %v97
  %120 = vmatprep.subr.bf16.mxu0 0
  %121 = vmatpush1.bf16.msra.mxu0 %v96
  %122 = vmatprep.subr.bf16.mxu0 0
  %123 = vmatpush1.bf16.msra.mxu0 %v95
  %124 = vmatprep.subr.bf16.mxu0 0
  %125 = vmatpush1.bf16.msra.mxu0 %v94
  %126 = vmatprep.subr.bf16.mxu0 0
  %127 = vmatpush1.bf16.msra.mxu0 %v93
  %128 = vmatprep.subr.bf16.mxu0 0
  %129 = vmatpush1.bf16.msra.mxu0 %v92
  %130 = vmatprep.subr.bf16.mxu0 0
  %131 = vmatpush2.bf16.msra.mxu0 0
  %132 = vmatprep.subr.bf16.mxu0 0
  %133 = vmatpush2.bf16.msra.mxu0 0
  %134 = vmatprep.subr.bf16.mxu0 0
  %135 = vmatpush2.bf16.msra.mxu0 0
  %136 = vmatprep.subr.bf16.mxu0 0
  %137 = vmatpush2.bf16.msra.mxu0 0
  %138 = vmatprep.subr.bf16.mxu0 0
  %139 = vmatpush2.bf16.msra.mxu0 0
  %140 = vmatprep.subr.bf16.mxu0 0
  %141 = vmatpush2.bf16.msra.mxu0 0
  %142 = vmatprep.subr.bf16.mxu0 0
  %143 = vmatpush2.bf16.msra.mxu0 0
  %144 = vmatprep.subr.bf16.mxu0 0
  %145 = vmatpush2.bf16.msra.mxu0 %v100
  %146 = vmatprep.mubr.bf16.mxu0 %v112
  %147 = vmatmul.mubr.bf16.gmra.mxu0 %v53
  %v148 = vpop.f32.mrf.mxu0
  %v149 = vadd.f32 %v40, %v148
  %v150 = vpop.f32.mrf.mxu0
  %v151 = vpop.f32.mrf.mxu0
  %v152 = vadd.f32 %v45, %v151
  %v153 = vpop.f32.mrf.mxu0
  %154 = vdwg.mxu0
  %v155 = vmax.f32 %v149, 0.0
  %v156 = vmax.f32 %v152, 0.0
  %vm157 = vcmask 556032
  %158 = vst.msk [vmem:[%s3] sm:$0xff] %vm157, %v155
  %159 = vst.msk [vmem:[%s3 + $0x8] sm:$0xff] %vm157, %v156
  // Predicated region
  $region14: #{siamrpn_forward.7} parent=0 // pred_check
    _
  $region15: #{siamrpn_forward.7} parent=0 // pred_check_branch
    %161 = sbr.rel (0) target = $region17
  $region16: #{siamrpn_forward.7} parent=0 // pred_region
    _
  $region17: #{siamrpn_forward.7} parent=0 // pred_fallthru
    _
  // Predicated region
  $region18: #{siamrpn_forward.7} parent=0 // pred_check
    _
  $region19: #{siamrpn_forward.7} parent=0 // pred_check_branch
    %163 = sbr.rel (0) target = $region21
  $region20: #{siamrpn_forward.7} parent=0 // pred_region
    _
  $region21: #{siamrpn_forward.7} parent=0 // pred_fallthru
    _

// kernel: siamrpn_forward.8
$region0: #{siamrpn_forward.8}
  #allocation0 [shape = 'u32[]', space=smem, size = 0x4, offset = 0x4, fixed_abs, tag = 'smem constant byte address 0x4 - core index']
  #allocation1 [shape = 'u32[144,128]{1,0:T(1,128)}', space=vmem, size = 0x12000, scoped, tag = 'internal scratch']
  %s0 = inlined_call_operand.vmem [shape: bf16[192,144], index: 0, kind: input, shape index: {}]
  %s1 = inlined_call_operand.vmem [shape: bf16[144,2], index: 1, kind: input, shape index: {}]
  %s2 = inlined_call_operand.vmem [shape: f32[192,1], index: 2, kind: input, shape index: {}]
  %s3 = inlined_call_operand.vmem [shape: bf16[32,144], index: 3, kind: input, shape index: {}]
  %s4 = inlined_call_operand.vmem [shape: bf16[144,18], index: 4, kind: input, shape index: {}]
  %s5 = inlined_call_operand.vmem [shape: f32[32,1], index: 5, kind: input, shape index: {}]
  %s6 = inlined_call_operand.vmem [shape: f32[192,2], index: 6, kind: output, shape index: {0}]
  %s7 = inlined_call_operand.vmem [shape: f32[32,18], index: 7, kind: output, shape index: {1}]
  %8 = xla_tuple %s6, %s7
  %s9 = sld [smem:[#allocation0]]
  $region42: #{siamrpn_forward.8} parent=0
    _
  %s11 = ssub.s32 1, %s9
  %s12 = scalar_select 0, %s11, %s9
  // Predicated region
  $region2: #{siamrpn_forward.8} parent=0 // pred_check
    _
  $region3: #{siamrpn_forward.8} parent=0 // pred_check_branch
    %14 = sbr.rel (0) target = $region5
  $region4: #{siamrpn_forward.8} parent=0 // pred_region
    _
  $region5: #{siamrpn_forward.8} parent=0 // pred_fallthru
    _
  // Predicated region
  $region6: #{siamrpn_forward.8} parent=0 // pred_check
    _
  $region7: #{siamrpn_forward.8} parent=0 // pred_check_branch
    %16 = sbr.rel (0) target = $region9
  $region8: #{siamrpn_forward.8} parent=0 // pred_region
    _
  $region9: #{siamrpn_forward.8} parent=0 // pred_fallthru
    _
  // Predicated region
  $region10: #{siamrpn_forward.8} parent=0 // pred_check
    _
  $region11: #{siamrpn_forward.8} parent=0 // pred_check_branch
    %18 = sbr.rel (0) target = $region13
  $region12: #{siamrpn_forward.8} parent=0 // pred_region
    _
  $region13: #{siamrpn_forward.8} parent=0 // pred_fallthru
    _
  // Predicated region
  $region14: #{siamrpn_forward.8} parent=0 // pred_check
    _
  $region15: #{siamrpn_forward.8} parent=0 // pred_check_branch
    %20 = sbr.rel (0) target = $region17
  $region16: #{siamrpn_forward.8} parent=0 // pred_region
    _
  $region17: #{siamrpn_forward.8} parent=0 // pred_fallthru
    _
  // Predicated region
  $region18: #{siamrpn_forward.8} parent=0 // pred_check
    _
  $region19: #{siamrpn_forward.8} parent=0 // pred_check_branch
    %22 = sbr.rel (0) target = $region21
  $region20: #{siamrpn_forward.8} parent=0 // pred_region
    _
  $region21: #{siamrpn_forward.8} parent=0 // pred_fallthru
    _
  // Predicated region
  $region22: #{siamrpn_forward.8} parent=0 // pred_check
    _
  $region23: #{siamrpn_forward.8} parent=0 // pred_check_branch
    %24 = sbr.rel (0) target = $region25
  $region24: #{siamrpn_forward.8} parent=0 // pred_region
    _
  $region25: #{siamrpn_forward.8} parent=0 // pred_fallthru
    _
  %v26 = vld [vmem:[%s0] sm:$0xff]
  %v27 = vld [vmem:[%s0 + $0x8] sm:$0xff]
  %v28 = vld [vmem:[%s0 + $0x10] sm:$0xff]
  %v29 = vld [vmem:[%s0 + $0x18] sm:$0xff]
  %v30 = vld [vmem:[%s0 + $0x20] sm:$0xff]
  %v31 = vld [vmem:[%s0 + $0x28] sm:$0xff]
  %v32 = vld [vmem:[%s0 + $0x30] sm:$0xff]
  %v33 = vld [vmem:[%s0 + $0x38] sm:$0xff]
  %v34 = vld [vmem:[%s0 + $0x40] sm:$0xff]
  %v35 = vld [vmem:[%s0 + $0x48] sm:$0xff]
  %v36 = vld [vmem:[%s0 + $0x50] sm:$0xff]
  %v37 = vld [vmem:[%s0 + $0x58] sm:$0xff]
  %v38 = vld [vmem:[%s0 + $0x60] sm:$0xff]
  %v39 = vld [vmem:[%s0 + $0x68] sm:$0xff]
  %v40 = vld [vmem:[%s0 + $0x70] sm:$0xff]
  %v41 = vld [vmem:[%s0 + $0x78] sm:$0xff]
  %v42 = vld [vmem:[%s0 + $0x80] sm:$0xff]
  %v43 = vld [vmem:[%s0 + $0x88] sm:$0xff]
  %v44 = vld [vmem:[%s0 + $0x90] sm:$0xff]
  %v45 = vld [vmem:[%s0 + $0x98] sm:$0xff]
  %v46 = vld [vmem:[%s0 + $0xa0] sm:$0xff]
  %v47 = vld [vmem:[%s0 + $0xa8] sm:$0xff]
  %v48 = vld [vmem:[%s0 + $0xb0] sm:$0xff]
  %v49 = vld [vmem:[%s0 + $0xb8] sm:$0xff]
  %v50 = vld [vmem:[%s1] sm:$0xf]
  %v51 = vld [vmem:[%s1 + $0x4] sm:$0xf]
  %v52 = vld [vmem:[%s1 + $0x8] sm:$0xf]
  %v53 = vld [vmem:[%s1 + $0xc] sm:$0xf]
  %v54 = vld [vmem:[%s1 + $0x10] sm:$0xf]
  %v55 = vld [vmem:[%s1 + $0x14] sm:$0xf]
  %v56 = vld [vmem:[%s1 + $0x18] sm:$0xf]
  %v57 = vld [vmem:[%s1 + $0x1c] sm:$0xf]
  %v58 = vld [vmem:[%s1 + $0x20] sm:$0xf]
  %v59 = vld [vmem:[%s1 + $0x24] sm:$0xf]
  %v60 = vld [vmem:[%s1 + $0x28] sm:$0xf]
  %v61 = vld [vmem:[%s1 + $0x2c] sm:$0xf]
  %v62 = vld [vmem:[%s1 + $0x30] sm:$0xf]
  %v63 = vld [vmem:[%s1 + $0x34] sm:$0xf]
  %v64 = vld [vmem:[%s1 + $0x38] sm:$0xf]
  %v65 = vld [vmem:[%s1 + $0x3c] sm:$0xf]
  %v66 = vld [vmem:[%s1 + $0x40] sm:$0xf]
  %v67 = vld [vmem:[%s1 + $0x44] sm:$0xf]
  %v68 = vld [vmem:[%s2] sm:$0xff]
  %v69 = vld [vmem:[%s2 + $0x8] sm:$0xff]
  %v70 = vld [vmem:[%s2 + $0x10] sm:$0xff]
  %v71 = vld [vmem:[%s2 + $0x18] sm:$0xff]
  %v72 = vld [vmem:[%s2 + $0x20] sm:$0xff]
  %v73 = vld [vmem:[%s2 + $0x28] sm:$0xff]
  %v74 = vld [vmem:[%s2 + $0x30] sm:$0xff]
  %v75 = vld [vmem:[%s2 + $0x38] sm:$0xff]
  %v76 = vld [vmem:[%s2 + $0x40] sm:$0xff]
  %v77 = vld [vmem:[%s2 + $0x48] sm:$0xff]
  %v78 = vld [vmem:[%s2 + $0x50] sm:$0xff]
  %v79 = vld [vmem:[%s2 + $0x58] sm:$0xff]
  %v80 = vld [vmem:[%s2 + $0x60] sm:$0xff]
  %v81 = vld [vmem:[%s2 + $0x68] sm:$0xff]
  %v82 = vld [vmem:[%s2 + $0x70] sm:$0xff]
  %v83 = vld [vmem:[%s2 + $0x78] sm:$0xff]
  %v84 = vld [vmem:[%s2 + $0x80] sm:$0xff]
  %v85 = vld [vmem:[%s2 + $0x88] sm:$0xff]
  %v86 = vld [vmem:[%s2 + $0x90] sm:$0xff]
  %v87 = vld [vmem:[%s2 + $0x98] sm:$0xff]
  %v88 = vld [vmem:[%s2 + $0xa0] sm:$0xff]
  %v89 = vld [vmem:[%s2 + $0xa8] sm:$0xff]
  %v90 = vld [vmem:[%s2 + $0xb0] sm:$0xff]
  %v91 = vld [vmem:[%s2 + $0xb8] sm:$0xff]
  %93 = vset.pattern.permute.xlu0 0
  %94 = vperm.xlu0 %93, %v68
  %v95 = vpop.permute.xlu0 %94
  %98 = vset.pattern.permute.xlu0 0
  %99 = vperm.xlu0 %98, %v69
  %v100 = vpop.permute.xlu0 %99
  %103 = vset.pattern.permute.xlu0 0
  %104 = vperm.xlu0 %103, %v70
  %v105 = vpop.permute.xlu0 %104
  %108 = vset.pattern.permute.xlu0 0
  %109 = vperm.xlu0 %108, %v71
  %v110 = vpop.permute.xlu0 %109
  %113 = vset.pattern.permute.xlu0 0
  %114 = vperm.xlu0 %113, %v72
  %v115 = vpop.permute.xlu0 %114
  %118 = vset.pattern.permute.xlu0 0
  %119 = vperm.xlu0 %118, %v73
  %v120 = vpop.permute.xlu0 %119
  %123 = vset.pattern.permute.xlu0 0
  %124 = vperm.xlu0 %123, %v74
  %v125 = vpop.permute.xlu0 %124
  %128 = vset.pattern.permute.xlu0 0
  %129 = vperm.xlu0 %128, %v75
  %v130 = vpop.permute.xlu0 %129
  %133 = vset.pattern.permute.xlu0 0
  %134 = vperm.xlu0 %133, %v76
  %v135 = vpop.permute.xlu0 %134
  %138 = vset.pattern.permute.xlu0 0
  %139 = vperm.xlu0 %138, %v77
  %v140 = vpop.permute.xlu0 %139
  %143 = vset.pattern.permute.xlu0 0
  %144 = vperm.xlu0 %143, %v78
  %v145 = vpop.permute.xlu0 %144
  %148 = vset.pattern.permute.xlu0 0
  %149 = vperm.xlu0 %148, %v79
  %v150 = vpop.permute.xlu0 %149
  %153 = vset.pattern.permute.xlu0 0
  %154 = vperm.xlu0 %153, %v80
  %v155 = vpop.permute.xlu0 %154
  %158 = vset.pattern.permute.xlu0 0
  %159 = vperm.xlu0 %158, %v81
  %v160 = vpop.permute.xlu0 %159
  %163 = vset.pattern.permute.xlu0 0
  %164 = vperm.xlu0 %163, %v82
  %v165 = vpop.permute.xlu0 %164
  %168 = vset.pattern.permute.xlu0 0
  %169 = vperm.xlu0 %168, %v83
  %v170 = vpop.permute.xlu0 %169
  %173 = vset.pattern.permute.xlu0 0
  %174 = vperm.xlu0 %173, %v84
  %v175 = vpop.permute.xlu0 %174
  %178 = vset.pattern.permute.xlu0 0
  %179 = vperm.xlu0 %178, %v85
  %v180 = vpop.permute.xlu0 %179
  %183 = vset.pattern.permute.xlu0 0
  %184 = vperm.xlu0 %183, %v86
  %v185 = vpop.permute.xlu0 %184
  %188 = vset.pattern.permute.xlu0 0
  %189 = vperm.xlu0 %188, %v87
  %v190 = vpop.permute.xlu0 %189
  %193 = vset.pattern.permute.xlu0 0
  %194 = vperm.xlu0 %193, %v88
  %v195 = vpop.permute.xlu0 %194
  %198 = vset.pattern.permute.xlu0 0
  %199 = vperm.xlu0 %198, %v89
  %v200 = vpop.permute.xlu0 %199
  %203 = vset.pattern.permute.xlu0 0
  %204 = vperm.xlu0 %203, %v90
  %v205 = vpop.permute.xlu0 %204
  %208 = vset.pattern.permute.xlu0 0
  %209 = vperm.xlu0 %208, %v91
  %v210 = vpop.permute.xlu0 %209
  %v236 = vunpack.c.l.b16 %v26
  %v237 = vunpack.c.h.b16 %v26
  %v238 = vunpack.c.l.b16 %v27
  %v239 = vunpack.c.h.b16 %v27
  %v240 = vunpack.c.l.b16 %v28
  %v241 = vunpack.c.h.b16 %v28
  %v242 = vunpack.c.l.b16 %v29
  %v243 = vunpack.c.h.b16 %v29
  %v244 = vunpack.c.l.b16 %v30
  %v245 = vunpack.c.h.b16 %v30
  %v246 = vunpack.c.l.b16 %v31
  %v247 = vunpack.c.h.b16 %v31
  %v248 = vunpack.c.l.b16 %v32
  %v249 = vunpack.c.h.b16 %v32
  %v250 = vunpack.c.l.b16 %v33
  %v251 = vunpack.c.h.b16 %v33
  %v252 = vunpack.c.l.b16 %v34
  %v253 = vunpack.c.h.b16 %v34
  %v254 = vunpack.c.l.b16 %v35
  %v255 = vunpack.c.h.b16 %v35
  %v256 = vunpack.c.l.b16 %v36
  %v257 = vunpack.c.h.b16 %v36
  %v258 = vunpack.c.l.b16 %v37
  %v259 = vunpack.c.h.b16 %v37
  %v260 = vunpack.c.l.b16 %v38
  %v261 = vunpack.c.h.b16 %v38
  %v262 = vunpack.c.l.b16 %v39
  %v263 = vunpack.c.h.b16 %v39
  %v264 = vunpack.c.l.b16 %v40
  %v265 = vunpack.c.h.b16 %v40
  %v266 = vunpack.c.l.b16 %v41
  %v267 = vunpack.c.h.b16 %v41
  %v268 = vunpack.c.l.b16 %v42
  %v269 = vunpack.c.h.b16 %v42
  %v270 = vunpack.c.l.b16 %v43
  %v271 = vunpack.c.h.b16 %v43
  %v272 = vunpack.c.l.b16 %v44
  %v273 = vunpack.c.h.b16 %v44
  %v274 = vunpack.c.l.b16 %v45
  %v275 = vunpack.c.h.b16 %v45
  %v276 = vunpack.c.l.b16 %v46
  %v277 = vunpack.c.h.b16 %v46
  %v278 = vunpack.c.l.b16 %v47
  %v279 = vunpack.c.h.b16 %v47
  %v280 = vunpack.c.l.b16 %v48
  %v281 = vunpack.c.h.b16 %v48
  %v282 = vunpack.c.l.b16 %v49
  %v283 = vunpack.c.h.b16 %v49
  %v284 = vpack.c.b16 %v238, %v236
  %v285 = vpack.c.b16 %v239, %v237
  %v286 = vpack.c.b16 %v242, %v240
  %v287 = vpack.c.b16 %v243, %v241
  %v288 = vpack.c.b16 %v246, %v244
  %v289 = vpack.c.b16 %v247, %v245
  %v290 = vpack.c.b16 %v250, %v248
  %v291 = vpack.c.b16 %v251, %v249
  %v292 = vpack.c.b16 %v254, %v252
  %v293 = vpack.c.b16 %v255, %v253
  %v294 = vpack.c.b16 %v258, %v256
  %v295 = vpack.c.b16 %v259, %v257
  %v296 = vpack.c.b16 %v262, %v260
  %v297 = vpack.c.b16 %v263, %v261
  %v298 = vpack.c.b16 %v266, %v264
  %v299 = vpack.c.b16 %v267, %v265
  %v300 = vpack.c.b16 %v270, %v268
  %v301 = vpack.c.b16 %v271, %v269
  %v302 = vpack.c.b16 %v274, %v272
  %v303 = vpack.c.b16 %v275, %v273
  %v304 = vpack.c.b16 %v278, %v276
  %v305 = vpack.c.b16 %v279, %v277
  %v306 = vpack.c.b16 %v282, %v280
  %v307 = vpack.c.b16 %v283, %v281
  %v338 = vunpack.c.l.b16 %v50
  %v339 = vunpack.c.l.b16 %v51
  %v340 = vunpack.c.l.b16 %v52
  %v341 = vunpack.c.l.b16 %v53
  %v342 = vunpack.c.l.b16 %v54
  %v343 = vunpack.c.l.b16 %v55
  %v344 = vunpack.c.l.b16 %v56
  %v345 = vunpack.c.l.b16 %v57
  %v346 = vunpack.c.l.b16 %v58
  %v347 = vunpack.c.l.b16 %v59
  %v348 = vunpack.c.l.b16 %v60
  %v349 = vunpack.c.l.b16 %v61
  %v350 = vunpack.c.l.b16 %v62
  %v351 = vunpack.c.l.b16 %v63
  %v352 = vunpack.c.l.b16 %v64
  %v353 = vunpack.c.l.b16 %v65
  %v354 = vunpack.c.l.b16 %v66
  %v355 = vunpack.c.l.b16 %v67
  %v356 = vpack.c.b16 %v339, %v338
  %v357 = vpack.c.b16 %v341, %v340
  %v358 = vpack.c.b16 %v343, %v342
  %v359 = vpack.c.b16 %v345, %v344
  %v360 = vpack.c.b16 %v347, %v346
  %v361 = vpack.c.b16 %v349, %v348
  %v362 = vpack.c.b16 %v351, %v350
  %v363 = vpack.c.b16 %v353, %v352
  %v364 = vpack.c.b16 %v355, %v354
  %vm374 = vcmask 130048
  %v376 = vsel %vm374, %v285, 0
  %v379 = vsel %vm374, %v287, 0
  %v382 = vsel %vm374, %v289, 0
  %v385 = vsel %vm374, %v291, 0
  %v388 = vsel %vm374, %v293, 0
  %v391 = vsel %vm374, %v295, 0
  %v394 = vsel %vm374, %v297, 0
  %v397 = vsel %vm374, %v299, 0
  %v400 = vsel %vm374, %v301, 0
  %v403 = vsel %vm374, %v303, 0
  %v406 = vsel %vm374, %v305, 0
  %v409 = vsel %vm374, %v307, 0
  %411 = vmatprep.subr.bf16.mxu0 0
  %412 = vmatpush1.bf16.msra.mxu0 %v363
  %413 = vmatprep.subr.bf16.mxu0 0
  %414 = vmatpush1.bf16.msra.mxu0 %v362
  %415 = vmatprep.subr.bf16.mxu0 0
  %416 = vmatpush1.bf16.msra.mxu0 %v361
  %417 = vmatprep.subr.bf16.mxu0 0
  %418 = vmatpush1.bf16.msra.mxu0 %v360
  %419 = vmatprep.subr.bf16.mxu0 0
  %420 = vmatpush1.bf16.msra.mxu0 %v359
  %421 = vmatprep.subr.bf16.mxu0 0
  %422 = vmatpush1.bf16.msra.mxu0 %v358
  %423 = vmatprep.subr.bf16.mxu0 0
  %424 = vmatpush1.bf16.msra.mxu0 %v357
  %425 = vmatprep.subr.bf16.mxu0 0
  %426 = vmatpush1.bf16.msra.mxu0 %v356
  %427 = vmatprep.subr.bf16.mxu0 0
  %428 = vmatpush2.bf16.msra.mxu0 0
  %429 = vmatprep.subr.bf16.mxu0 0
  %430 = vmatpush2.bf16.msra.mxu0 0
  %431 = vmatprep.subr.bf16.mxu0 0
  %432 = vmatpush2.bf16.msra.mxu0 0
  %433 = vmatprep.subr.bf16.mxu0 0
  %434 = vmatpush2.bf16.msra.mxu0 0
  %435 = vmatprep.subr.bf16.mxu0 0
  %436 = vmatpush2.bf16.msra.mxu0 0
  %437 = vmatprep.subr.bf16.mxu0 0
  %438 = vmatpush2.bf16.msra.mxu0 0
  %439 = vmatprep.subr.bf16.mxu0 0
  %440 = vmatpush2.bf16.msra.mxu0 0
  %441 = vmatprep.subr.bf16.mxu0 0
  %442 = vmatpush2.bf16.msra.mxu0 %v364
  %443 = vmatprep.mubr.bf16.mxu0 %v376
  %444 = vmatmul.mubr.bf16.gmra.mxu0 %v284
  %v445 = vpop.f32.mrf.mxu0
  %v446 = vadd.f32 %v95, %v445
  %v447 = vpop.f32.mrf.mxu0
  %v448 = vpop.f32.mrf.mxu0
  %v449 = vadd.f32 %v100, %v448
  %v450 = vpop.f32.mrf.mxu0
  %451 = vmatprep.mubr.bf16.mxu0 %v379
  %452 = vmatmul.mubr.bf16.gmra.mxu0 %v286
  %v453 = vpop.f32.mrf.mxu0
  %v454 = vadd.f32 %v105, %v453
  %v455 = vpop.f32.mrf.mxu0
  %v456 = vpop.f32.mrf.mxu0
  %v457 = vadd.f32 %v110, %v456
  %v458 = vpop.f32.mrf.mxu0
  %459 = vmatprep.mubr.bf16.mxu0 %v382
  %460 = vmatmul.mubr.bf16.gmra.mxu0 %v288
  %v461 = vpop.f32.mrf.mxu0
  %v462 = vadd.f32 %v115, %v461
  %v463 = vpop.f32.mrf.mxu0
  %v464 = vpop.f32.mrf.mxu0
  %v465 = vadd.f32 %v120, %v464
  %v466 = vpop.f32.mrf.mxu0
  %467 = vmatprep.mubr.bf16.mxu0 %v385
  %468 = vmatmul.mubr.bf16.gmra.mxu0 %v290
  %v469 = vpop.f32.mrf.mxu0
  %v470 = vadd.f32 %v125, %v469
  %v471 = vpop.f32.mrf.mxu0
  %v472 = vpop.f32.mrf.mxu0
  %v473 = vadd.f32 %v130, %v472
  %v474 = vpop.f32.mrf.mxu0
  %475 = vmatprep.mubr.bf16.mxu0 %v388
  %476 = vmatmul.mubr.bf16.gmra.mxu0 %v292
  %v477 = vpop.f32.mrf.mxu0
  %v478 = vadd.f32 %v135, %v477
  %v479 = vpop.f32.mrf.mxu0
  %v480 = vpop.f32.mrf.mxu0
  %v481 = vadd.f32 %v140, %v480
  %v482 = vpop.f32.mrf.mxu0
  %483 = vmatprep.mubr.bf16.mxu0 %v391
  %484 = vmatmul.mubr.bf16.gmra.mxu0 %v294
  %v485 = vpop.f32.mrf.mxu0
  %v486 = vadd.f32 %v145, %v485
  %v487 = vpop.f32.mrf.mxu0
  %v488 = vpop.f32.mrf.mxu0
  %v489 = vadd.f32 %v150, %v488
  %v490 = vpop.f32.mrf.mxu0
  %491 = vmatprep.mubr.bf16.mxu0 %v394
  %492 = vmatmul.mubr.bf16.gmra.mxu0 %v296
  %v493 = vpop.f32.mrf.mxu0
  %v494 = vadd.f32 %v155, %v493
  %v495 = vpop.f32.mrf.mxu0
  %v496 = vpop.f32.mrf.mxu0
  %v497 = vadd.f32 %v160, %v496
  %v498 = vpop.f32.mrf.mxu0
  %499 = vmatprep.mubr.bf16.mxu0 %v397
  %500 = vmatmul.mubr.bf16.gmra.mxu0 %v298
  %v501 = vpop.f32.mrf.mxu0
  %v502 = vadd.f32 %v165, %v501
  %v503 = vpop.f32.mrf.mxu0
  %v504 = vpop.f32.mrf.mxu0
  %v505 = vadd.f32 %v170, %v504
  %v506 = vpop.f32.mrf.mxu0
  %507 = vmatprep.mubr.bf16.mxu0 %v400
  %508 = vmatmul.mubr.bf16.gmra.mxu0 %v300
  %v509 = vpop.f32.mrf.mxu0
  %v510 = vadd.f32 %v175, %v509
  %v511 = vpop.f32.mrf.mxu0
  %v512 = vpop.f32.mrf.mxu0
  %v513 = vadd.f32 %v180, %v512
  %v514 = vpop.f32.mrf.mxu0
  %515 = vmatprep.mubr.bf16.mxu0 %v403
  %516 = vmatmul.mubr.bf16.gmra.mxu0 %v302
  %v517 = vpop.f32.mrf.mxu0
  %v518 = vadd.f32 %v185, %v517
  %v519 = vpop.f32.mrf.mxu0
  %v520 = vpop.f32.mrf.mxu0
  %v521 = vadd.f32 %v190, %v520
  %v522 = vpop.f32.mrf.mxu0
  %523 = vmatprep.mubr.bf16.mxu0 %v406
  %524 = vmatmul.mubr.bf16.gmra.mxu0 %v304
  %v525 = vpop.f32.mrf.mxu0
  %v526 = vadd.f32 %v195, %v525
  %v527 = vpop.f32.mrf.mxu0
  %v528 = vpop.f32.mrf.mxu0
  %v529 = vadd.f32 %v200, %v528
  %v530 = vpop.f32.mrf.mxu0
  %531 = vmatprep.mubr.bf16.mxu0 %v409
  %532 = vmatmul.mubr.bf16.gmra.mxu0 %v306
  %v533 = vpop.f32.mrf.mxu0
  %v534 = vadd.f32 %v205, %v533
  %v535 = vpop.f32.mrf.mxu0
  %v536 = vpop.f32.mrf.mxu0
  %v537 = vadd.f32 %v210, %v536
  %v538 = vpop.f32.mrf.mxu0
  %539 = vdwg.mxu0
  %vm540 = vcmask 15360
  %541 = vst.msk [vmem:[%s6] sm:$0xff] %vm540, %v446
  %542 = vst.msk [vmem:[%s6 + $0x8] sm:$0xff] %vm540, %v449
  %543 = vst.msk [vmem:[%s6 + $0x10] sm:$0xff] %vm540, %v454
  %544 = vst.msk [vmem:[%s6 + $0x18] sm:$0xff] %vm540, %v457
  %545 = vst.msk [vmem:[%s6 + $0x20] sm:$0xff] %vm540, %v462
  %546 = vst.msk [vmem:[%s6 + $0x28] sm:$0xff] %vm540, %v465
  %547 = vst.msk [vmem:[%s6 + $0x30] sm:$0xff] %vm540, %v470
  %548 = vst.msk [vmem:[%s6 + $0x38] sm:$0xff] %vm540, %v473
  %549 = vst.msk [vmem:[%s6 + $0x40] sm:$0xff] %vm540, %v478
  %550 = vst.msk [vmem:[%s6 + $0x48] sm:$0xff] %vm540, %v481
  %551 = vst.msk [vmem:[%s6 + $0x50] sm:$0xff] %vm540, %v486
  %552 = vst.msk [vmem:[%s6 + $0x58] sm:$0xff] %vm540, %v489
  %553 = vst.msk [vmem:[%s6 + $0x60] sm:$0xff] %vm540, %v494
  %554 = vst.msk [vmem:[%s6 + $0x68] sm:$0xff] %vm540, %v497
  %555 = vst.msk [vmem:[%s6 + $0x70] sm:$0xff] %vm540, %v502
  %556 = vst.msk [vmem:[%s6 + $0x78] sm:$0xff] %vm540, %v505
  %557 = vst.msk [vmem:[%s6 + $0x80] sm:$0xff] %vm540, %v510
  %558 = vst.msk [vmem:[%s6 + $0x88] sm:$0xff] %vm540, %v513
  %559 = vst.msk [vmem:[%s6 + $0x90] sm:$0xff] %vm540, %v518
  %560 = vst.msk [vmem:[%s6 + $0x98] sm:$0xff] %vm540, %v521
  %561 = vst.msk [vmem:[%s6 + $0xa0] sm:$0xff] %vm540, %v526
  %562 = vst.msk [vmem:[%s6 + $0xa8] sm:$0xff] %vm540, %v529
  %563 = vst.msk [vmem:[%s6 + $0xb0] sm:$0xff] %vm540, %v534
  %564 = vst.msk [vmem:[%s6 + $0xb8] sm:$0xff] %vm540, %v537
  %v565 = vld [vmem:[%s3] sm:$0xff]
  %v566 = vld [vmem:[%s3 + $0x8] sm:$0xff]
  %v567 = vld [vmem:[%s3 + $0x10] sm:$0xff]
  %v568 = vld [vmem:[%s3 + $0x18] sm:$0xff]
  %v569 = vld [vmem:[%s4] sm:$0xf]
  %v570 = vld [vmem:[%s4 + $0x4] sm:$0xf]
  %v571 = vld [vmem:[%s4 + $0x8] sm:$0xf]
  %v572 = vld [vmem:[%s4 + $0xc] sm:$0xf]
  %v573 = vld [vmem:[%s4 + $0x10] sm:$0xf]
  %v574 = vld [vmem:[%s4 + $0x14] sm:$0xf]
  %v575 = vld [vmem:[%s4 + $0x18] sm:$0xf]
  %v576 = vld [vmem:[%s4 + $0x1c] sm:$0xf]
  %v577 = vld [vmem:[%s4 + $0x20] sm:$0xf]
  %v578 = vld [vmem:[%s4 + $0x24] sm:$0xf]
  %v579 = vld [vmem:[%s4 + $0x28] sm:$0xf]
  %v580 = vld [vmem:[%s4 + $0x2c] sm:$0xf]
  %v581 = vld [vmem:[%s4 + $0x30] sm:$0xf]
  %v582 = vld [vmem:[%s4 + $0x34] sm:$0xf]
  %v583 = vld [vmem:[%s4 + $0x38] sm:$0xf]
  %v584 = vld [vmem:[%s4 + $0x3c] sm:$0xf]
  %v585 = vld [vmem:[%s4 + $0x40] sm:$0xf]
  %v586 = vld [vmem:[%s4 + $0x44] sm:$0xf]
  %v587 = vld [vmem:[%s5] sm:$0xff]
  %v588 = vld [vmem:[%s5 + $0x8] sm:$0xff]
  %v589 = vld [vmem:[%s5 + $0x10] sm:$0xff]
  %v590 = vld [vmem:[%s5 + $0x18] sm:$0xff]
  %592 = vset.pattern.permute.xlu0 0
  %593 = vperm.xlu0 %592, %v587
  %v594 = vpop.permute.xlu0 %593
  %597 = vset.pattern.permute.xlu0 0
  %598 = vperm.xlu0 %597, %v588
  %v599 = vpop.permute.xlu0 %598
  %602 = vset.pattern.permute.xlu0 0
  %603 = vperm.xlu0 %602, %v589
  %v604 = vpop.permute.xlu0 %603
  %607 = vset.pattern.permute.xlu0 0
  %608 = vperm.xlu0 %607, %v590
  %v609 = vpop.permute.xlu0 %608
  %v615 = vunpack.c.l.b16 %v565
  %v616 = vunpack.c.h.b16 %v565
  %v617 = vunpack.c.l.b16 %v566
  %v618 = vunpack.c.h.b16 %v566
  %v619 = vunpack.c.l.b16 %v567
  %v620 = vunpack.c.h.b16 %v567
  %v621 = vunpack.c.l.b16 %v568
  %v622 = vunpack.c.h.b16 %v568
  %v623 = vpack.c.b16 %v617, %v615
  %v624 = vpack.c.b16 %v618, %v616
  %v625 = vpack.c.b16 %v621, %v619
  %v626 = vpack.c.b16 %v622, %v620
  %v647 = vunpack.c.l.b16 %v569
  %v648 = vunpack.c.l.b16 %v570
  %v649 = vunpack.c.l.b16 %v571
  %v650 = vunpack.c.l.b16 %v572
  %v651 = vunpack.c.l.b16 %v573
  %v652 = vunpack.c.l.b16 %v574
  %v653 = vunpack.c.l.b16 %v575
  %v654 = vunpack.c.l.b16 %v576
  %v655 = vunpack.c.l.b16 %v577
  %v656 = vunpack.c.l.b16 %v578
  %v657 = vunpack.c.l.b16 %v579
  %v658 = vunpack.c.l.b16 %v580
  %v659 = vunpack.c.l.b16 %v581
  %v660 = vunpack.c.l.b16 %v582
  %v661 = vunpack.c.l.b16 %v583
  %v662 = vunpack.c.l.b16 %v584
  %v663 = vunpack.c.l.b16 %v585
  %v664 = vunpack.c.l.b16 %v586
  %v665 = vpack.c.b16 %v648, %v647
  %v666 = vpack.c.b16 %v650, %v649
  %v667 = vpack.c.b16 %v652, %v651
  %v668 = vpack.c.b16 %v654, %v653
  %v669 = vpack.c.b16 %v656, %v655
  %v670 = vpack.c.b16 %v658, %v657
  %v671 = vpack.c.b16 %v660, %v659
  %v672 = vpack.c.b16 %v662, %v661
  %v673 = vpack.c.b16 %v664, %v663
  %v684 = vsel %vm374, %v624, 0
  %v687 = vsel %vm374, %v626, 0
  %689 = vmatprep.subr.bf16.mxu0 0
  %690 = vmatpush1.bf16.msra.mxu0 %v672
  %691 = vmatprep.subr.bf16.mxu0 0
  %692 = vmatpush1.bf16.msra.mxu0 %v671
  %693 = vmatprep.subr.bf16.mxu0 0
  %694 = vmatpush1.bf16.msra.mxu0 %v670
  %695 = vmatprep.subr.bf16.mxu0 0
  %696 = vmatpush1.bf16.msra.mxu0 %v669
  %697 = vmatprep.subr.bf16.mxu0 0
  %698 = vmatpush1.bf16.msra.mxu0 %v668
  %699 = vmatprep.subr.bf16.mxu0 0
  %700 = vmatpush1.bf16.msra.mxu0 %v667
  %701 = vmatprep.subr.bf16.mxu0 0
  %702 = vmatpush1.bf16.msra.mxu0 %v666
  %703 = vmatprep.subr.bf16.mxu0 0
  %704 = vmatpush1.bf16.msra.mxu0 %v665
  %705 = vmatprep.subr.bf16.mxu0 0
  %706 = vmatpush2.bf16.msra.mxu0 0
  %707 = vmatprep.subr.bf16.mxu0 0
  %708 = vmatpush2.bf16.msra.mxu0 0
  %709 = vmatprep.subr.bf16.mxu0 0
  %710 = vmatpush2.bf16.msra.mxu0 0
  %711 = vmatprep.subr.bf16.mxu0 0
  %712 = vmatpush2.bf16.msra.mxu0 0
  %713 = vmatprep.subr.bf16.mxu0 0
  %714 = vmatpush2.bf16.msra.mxu0 0
  %715 = vmatprep.subr.bf16.mxu0 0
  %716 = vmatpush2.bf16.msra.mxu0 0
  %717 = vmatprep.subr.bf16.mxu0 0
  %718 = vmatpush2.bf16.msra.mxu0 0
  %719 = vmatprep.subr.bf16.mxu0 0
  %720 = vmatpush2.bf16.msra.mxu0 %v673
  %721 = vmatprep.mubr.bf16.mxu0 %v684
  %722 = vmatmul.mubr.bf16.gmra.mxu0 %v623
  %v723 = vpop.f32.mrf.mxu0
  %v724 = vadd.f32 %v594, %v723
  %v725 = vpop.f32.mrf.mxu0
  %v726 = vpop.f32.mrf.mxu0
  %v727 = vadd.f32 %v599, %v726
  %v728 = vpop.f32.mrf.mxu0
  %729 = vmatprep.mubr.bf16.mxu0 %v687
  %730 = vmatmul.mubr.bf16.gmra.mxu0 %v625
  %v731 = vpop.f32.mrf.mxu0
  %v732 = vadd.f32 %v604, %v731
  %v733 = vpop.f32.mrf.mxu0
  %v734 = vpop.f32.mrf.mxu0
  %v735 = vadd.f32 %v609, %v734
  %v736 = vpop.f32.mrf.mxu0
  %737 = vdwg.mxu0
  %vm738 = vcmask 146432
  %739 = vst.msk [vmem:[%s7] sm:$0xff] %vm738, %v724
  %740 = vst.msk [vmem:[%s7 + $0x8] sm:$0xff] %vm738, %v727
  %741 = vst.msk [vmem:[%s7 + $0x10] sm:$0xff] %vm738, %v732
  %742 = vst.msk [vmem:[%s7 + $0x18] sm:$0xff] %vm738, %v735
  // Predicated region
  $region26: #{siamrpn_forward.8} parent=0 // pred_check
    _
  $region27: #{siamrpn_forward.8} parent=0 // pred_check_branch
    %744 = sbr.rel (0) target = $region29
  $region28: #{siamrpn_forward.8} parent=0 // pred_region
    _
  $region29: #{siamrpn_forward.8} parent=0 // pred_fallthru
    _
  // Predicated region
  $region30: #{siamrpn_forward.8} parent=0 // pred_check
    _
  $region31: #{siamrpn_forward.8} parent=0 // pred_check_branch
    %746 = sbr.rel (0) target = $region33
  $region32: #{siamrpn_forward.8} parent=0 // pred_region
    _
  $region33: #{siamrpn_forward.8} parent=0 // pred_fallthru
    _
  // Predicated region
  $region34: #{siamrpn_forward.8} parent=0 // pred_check
    _
  $region35: #{siamrpn_forward.8} parent=0 // pred_check_branch
    %748 = sbr.rel (0) target = $region37
  $region36: #{siamrpn_forward.8} parent=0 // pred_region
    _
  $region37: #{siamrpn_forward.8} parent=0 // pred_fallthru
    _
  // Predicated region
  $region38: #{siamrpn_forward.8} parent=0 // pred_check
    _
  $region39: #{siamrpn_forward.8} parent=0 // pred_check_branch
    %750 = sbr.rel (0) target = $region41
  $region40: #{siamrpn_forward.8} parent=0 // pred_region
    _
  $region41: #{siamrpn_forward.8} parent=0 // pred_fallthru
    _

// kernel: siamrpn_forward.9
$region0: #{siamrpn_forward.9}
  #allocation0 [shape = 'u32[]', space=smem, size = 0x4, offset = 0x4, fixed_abs, tag = 'smem constant byte address 0x4 - core index']
  #allocation1 [shape = 'u32[144,128]{1,0:T(1,128)}', space=vmem, size = 0x12000, scoped, tag = 'internal scratch']
  %s0 = inlined_call_operand.vmem [shape: f32[32,4], index: 0, kind: input, shape index: {}]
  %s1 = inlined_call_operand.vmem [shape: f32[32,8], index: 1, kind: input, shape index: {}]
  %s2 = inlined_call_operand.vmem [shape: f32[18,16], index: 2, kind: input, shape index: {}]
  %s3 = inlined_call_operand.vmem [shape: f32[18,16], index: 3, kind: input, shape index: {}]
  %s4 = inlined_call_operand.vmem [shape: f32[8,8], index: 4, kind: input, shape index: {}]
  %s5 = inlined_call_operand.vmem [shape: f32[1,8], index: 5, kind: input, shape index: {}]
  %s6 = inlined_call_operand.vmem [shape: f32[18,4], index: 6, kind: output, shape index: {0}]
  %s7 = inlined_call_operand.vmem [shape: f32[18,8], index: 7, kind: output, shape index: {1}]
  %8 = xla_tuple %s6, %s7
  %s9 = sld [smem:[#allocation0]]
  $region42: #{siamrpn_forward.9} parent=0
    _
  %s11 = ssub.s32 1, %s9
  %s12 = scalar_select 0, %s11, %s9
  // Predicated region
  $region2: #{siamrpn_forward.9} parent=0 // pred_check
    _
  $region3: #{siamrpn_forward.9} parent=0 // pred_check_branch
    %14 = sbr.rel (0) target = $region5
  $region4: #{siamrpn_forward.9} parent=0 // pred_region
    _
  $region5: #{siamrpn_forward.9} parent=0 // pred_fallthru
    _
  // Predicated region
  $region6: #{siamrpn_forward.9} parent=0 // pred_check
    _
  $region7: #{siamrpn_forward.9} parent=0 // pred_check_branch
    %16 = sbr.rel (0) target = $region9
  $region8: #{siamrpn_forward.9} parent=0 // pred_region
    _
  $region9: #{siamrpn_forward.9} parent=0 // pred_fallthru
    _
  // Predicated region
  $region10: #{siamrpn_forward.9} parent=0 // pred_check
    _
  $region11: #{siamrpn_forward.9} parent=0 // pred_check_branch
    %18 = sbr.rel (0) target = $region13
  $region12: #{siamrpn_forward.9} parent=0 // pred_region
    _
  $region13: #{siamrpn_forward.9} parent=0 // pred_fallthru
    _
  // Predicated region
  $region14: #{siamrpn_forward.9} parent=0 // pred_check
    _
  $region15: #{siamrpn_forward.9} parent=0 // pred_check_branch
    %20 = sbr.rel (0) target = $region17
  $region16: #{siamrpn_forward.9} parent=0 // pred_region
    _
  $region17: #{siamrpn_forward.9} parent=0 // pred_fallthru
    _
  // Predicated region
  $region18: #{siamrpn_forward.9} parent=0 // pred_check
    _
  $region19: #{siamrpn_forward.9} parent=0 // pred_check_branch
    %22 = sbr.rel (0) target = $region21
  $region20: #{siamrpn_forward.9} parent=0 // pred_region
    _
  $region21: #{siamrpn_forward.9} parent=0 // pred_fallthru
    _
  // Predicated region
  $region22: #{siamrpn_forward.9} parent=0 // pred_check
    _
  $region23: #{siamrpn_forward.9} parent=0 // pred_check_branch
    %24 = sbr.rel (0) target = $region25
  $region24: #{siamrpn_forward.9} parent=0 // pred_region
    _
  $region25: #{siamrpn_forward.9} parent=0 // pred_fallthru
    _
  %v25 = vld [vmem:[%s4] sm:$0xff]
  %v26 = vld [vmem:[%s5] sm:$0x1]
  %v27 = vld [vmem:[%s0] sm:$0xff]
  %v28 = vld [vmem:[%s0 + $0x8] sm:$0xff]
  %v29 = vld [vmem:[%s1] sm:$0xff]
  %v30 = vld [vmem:[%s1 + $0x8] sm:$0xff]
  %v31 = vld [vmem:[%s2] sm:$0xff]
  %v32 = vld [vmem:[%s2 + $0x8] sm:$0x1]
  %v33 = vld [vmem:[%s3] sm:$0xff]
  %v34 = vld [vmem:[%s3 + $0x8] sm:$0x1]
  %vm35 = vcmask 130048
  %v37 = vsel %vm35, %v31, 0
  %v40 = vsel %vm35, %v32, 0
  %42 = vmatprep.subr.mxu0 0.0
  %43 = vmatpush1.msra.mxu0 0.0
  %44 = vmatprep.subr.mxu0 0.0
  %45 = vmatpush1.msra.mxu0 0.0
  %46 = vmatprep.subr.mxu0 0.0
  %47 = vmatpush1.msra.mxu0 0.0
  %48 = vmatprep.subr.mxu0 0.0
  %49 = vmatpush1.msra.mxu0 0.0
  %50 = vmatprep.subr.mxu0 0.0
  %51 = vmatpush1.msra.mxu0 0.0
  %52 = vmatprep.subr.mxu0 0.0
  %53 = vmatpush1.msra.mxu0 0.0
  %54 = vmatprep.subr.mxu0 0.0
  %55 = vmatpush1.msra.mxu0 0.0
  %56 = vmatprep.subr.mxu0 0.0
  %57 = vmatpush1.msra.mxu0 0.0
  %58 = vmatprep.subr.mxu0 0.0
  %59 = vmatpush1.msra.mxu0 0.0
  %60 = vmatprep.subr.mxu0 0.0
  %61 = vmatpush1.msra.mxu0 0.0
  %62 = vmatprep.subr.mxu0 0.0
  %63 = vmatpush1.msra.mxu0 0.0
  %64 = vmatprep.subr.mxu0 0.0
  %65 = vmatpush1.msra.mxu0 0.0
  %66 = vmatprep.subr.mxu0 0.0
  %67 = vmatpush1.msra.mxu0 0.0
  %68 = vmatprep.subr.mxu0 0.0
  %69 = vmatpush1.msra.mxu0 0.0
  %70 = vmatprep.subr.mxu0 0.0
  %71 = vmatpush1.msra.mxu0 %v28
  %72 = vmatprep.subr.mxu0 0.0
  %73 = vmatpush1.msra.mxu0 %v27
  %74 = vmatprep.subr.mxu0 0.0
  %75 = vmatpush2.msra.mxu0 0.0
  %76 = vmatprep.subr.mxu0 0.0
  %77 = vmatpush2.msra.mxu0 0.0
  %78 = vmatprep.subr.mxu0 0.0
  %79 = vmatpush2.msra.mxu0 0.0
  %80 = vmatprep.subr.mxu0 0.0
  %81 = vmatpush2.msra.mxu0 0.0
  %82 = vmatprep.subr.mxu0 0.0
  %83 = vmatpush2.msra.mxu0 0.0
  %84 = vmatprep.subr.mxu0 0.0
  %85 = vmatpush2.msra.mxu0 0.0
  %86 = vmatprep.subr.mxu0 0.0
  %87 = vmatpush2.msra.mxu0 0.0
  %88 = vmatprep.subr.mxu0 0.0
  %89 = vmatpush2.msra.mxu0 0.0
  %90 = vmatprep.subr.mxu0 0.0
  %91 = vmatpush2.msra.mxu0 0.0
  %92 = vmatprep.subr.mxu0 0.0
  %93 = vmatpush2.msra.mxu0 0.0
  %94 = vmatprep.subr.mxu0 0.0
  %95 = vmatpush2.msra.mxu0 0.0
  %96 = vmatprep.subr.mxu0 0.0
  %97 = vmatpush2.msra.mxu0 0.0
  %98 = vmatprep.subr.mxu0 0.0
  %99 = vmatpush2.msra.mxu0 0.0
  %100 = vmatprep.subr.mxu0 0.0
  %101 = vmatpush2.msra.mxu0 0.0
  %102 = vmatprep.subr.mxu0 0.0
  %103 = vmatpush2.msra.mxu0 0.0
  %104 = vmatprep.subr.mxu0 0.0
  %105 = vmatpush2.msra.mxu0 0.0
  %106 = vmatprep.mubr.f32.mxu0 0.0
  %107 = vmatmul.mubr.f32.gmra.mxu0 %v37
  %v108 = vpop.f32.mrf.mxu0
  %v109 = vadd.f32 0.0, %v108
  %v110 = vpop.f32.mrf.mxu0
  %111 = vmatprep.mubr.f32.mxu0 0.0
  %112 = vmatmul.mubr.f32.gmra.mxu0 %v40
  %v113 = vpop.f32.mrf.mxu0
  %v114 = vadd.f32 0.0, %v113
  %v115 = vpop.f32.mrf.mxu0
  %116 = vdwg.mxu0
  %v118 = vsel %vm35, %v33, 0
  %v121 = vsel %vm35, %v34, 0
  %123 = vmatprep.subr.mxu0 0.0
  %124 = vmatpush1.msra.mxu0 0.0
  %125 = vmatprep.subr.mxu0 0.0
  %126 = vmatpush1.msra.mxu0 0.0
  %127 = vmatprep.subr.mxu0 0.0
  %128 = vmatpush1.msra.mxu0 0.0
  %129 = vmatprep.subr.mxu0 0.0
  %130 = vmatpush1.msra.mxu0 0.0
  %131 = vmatprep.subr.mxu0 0.0
  %132 = vmatpush1.msra.mxu0 0.0
  %133 = vmatprep.subr.mxu0 0.0
  %134 = vmatpush1.msra.mxu0 0.0
  %135 = vmatprep.subr.mxu0 0.0
  %136 = vmatpush1.msra.mxu0 0.0
  %137 = vmatprep.subr.mxu0 0.0
  %138 = vmatpush1.msra.mxu0 0.0
  %139 = vmatprep.subr.mxu0 0.0
  %140 = vmatpush1.msra.mxu0 0.0
  %141 = vmatprep.subr.mxu0 0.0
  %142 = vmatpush1.msra.mxu0 0.0
  %143 = vmatprep.subr.mxu0 0.0
  %144 = vmatpush1.msra.mxu0 0.0
  %145 = vmatprep.subr.mxu0 0.0
  %146 = vmatpush1.msra.mxu0 0.0
  %147 = vmatprep.subr.mxu0 0.0
  %148 = vmatpush1.msra.mxu0 0.0
  %149 = vmatprep.subr.mxu0 0.0
  %150 = vmatpush1.msra.mxu0 0.0
  %151 = vmatprep.subr.mxu0 0.0
  %152 = vmatpush1.msra.mxu0 %v30
  %153 = vmatprep.subr.mxu0 0.0
  %154 = vmatpush1.msra.mxu0 %v29
  %155 = vmatprep.subr.mxu0 0.0
  %156 = vmatpush2.msra.mxu0 0.0
  %157 = vmatprep.subr.mxu0 0.0
  %158 = vmatpush2.msra.mxu0 0.0
  %159 = vmatprep.subr.mxu0 0.0
  %160 = vmatpush2.msra.mxu0 0.0
  %161 = vmatprep.subr.mxu0 0.0
  %162 = vmatpush2.msra.mxu0 0.0
  %163 = vmatprep.subr.mxu0 0.0
  %164 = vmatpush2.msra.mxu0 0.0
  %165 = vmatprep.subr.mxu0 0.0
  %166 = vmatpush2.msra.mxu0 0.0
  %167 = vmatprep.subr.mxu0 0.0
  %168 = vmatpush2.msra.mxu0 0.0
  %169 = vmatprep.subr.mxu0 0.0
  %170 = vmatpush2.msra.mxu0 0.0
  %171 = vmatprep.subr.mxu0 0.0
  %172 = vmatpush2.msra.mxu0 0.0
  %173 = vmatprep.subr.mxu0 0.0
  %174 = vmatpush2.msra.mxu0 0.0
  %175 = vmatprep.subr.mxu0 0.0
  %176 = vmatpush2.msra.mxu0 0.0
  %177 = vmatprep.subr.mxu0 0.0
  %178 = vmatpush2.msra.mxu0 0.0
  %179 = vmatprep.subr.mxu0 0.0
  %180 = vmatpush2.msra.mxu0 0.0
  %181 = vmatprep.subr.mxu0 0.0
  %182 = vmatpush2.msra.mxu0 0.0
  %183 = vmatprep.subr.mxu0 0.0
  %184 = vmatpush2.msra.mxu0 0.0
  %185 = vmatprep.subr.mxu0 0.0
  %186 = vmatpush2.msra.mxu0 0.0
  %187 = vmatprep.mubr.f32.mxu0 0.0
  %188 = vmatmul.mubr.f32.gmra.mxu0 %v118
  %v189 = vpop.f32.mrf.mxu0
  %v190 = vadd.f32 0.0, %v189
  %v191 = vpop.f32.mrf.mxu0
  %192 = vmatprep.mubr.f32.mxu0 0.0
  %193 = vmatmul.mubr.f32.gmra.mxu0 %v121
  %v194 = vpop.f32.mrf.mxu0
  %v195 = vadd.f32 0.0, %v194
  %v196 = vpop.f32.mrf.mxu0
  %197 = vdwg.mxu0
  %v199 = vlaneseq
  %v200 = vshrl.u32 %v199, 7
  %v201 = vsub.s32 0, %v200
  %v202 = vrot.slane %v26, %v201
  %vm204 = vcmask 64512
  %v206 = vsel %vm204, %v190, 0
  %v209 = vsel %vm204, %v195, 0
  %211 = vmatprep.subr.mxu0 0.0
  %212 = vmatpush1.msra.mxu0 0.0
  %213 = vmatprep.subr.mxu0 0.0
  %214 = vmatpush1.msra.mxu0 0.0
  %215 = vmatprep.subr.mxu0 0.0
  %216 = vmatpush1.msra.mxu0 0.0
  %217 = vmatprep.subr.mxu0 0.0
  %218 = vmatpush1.msra.mxu0 0.0
  %219 = vmatprep.subr.mxu0 0.0
  %220 = vmatpush1.msra.mxu0 0.0
  %221 = vmatprep.subr.mxu0 0.0
  %222 = vmatpush1.msra.mxu0 0.0
  %223 = vmatprep.subr.mxu0 0.0
  %224 = vmatpush1.msra.mxu0 0.0
  %225 = vmatprep.subr.mxu0 0.0
  %226 = vmatpush1.msra.mxu0 0.0
  %227 = vmatprep.subr.mxu0 0.0
  %228 = vmatpush1.msra.mxu0 0.0
  %229 = vmatprep.subr.mxu0 0.0
  %230 = vmatpush1.msra.mxu0 0.0
  %231 = vmatprep.subr.mxu0 0.0
  %232 = vmatpush1.msra.mxu0 0.0
  %233 = vmatprep.subr.mxu0 0.0
  %234 = vmatpush1.msra.mxu0 0.0
  %235 = vmatprep.subr.mxu0 0.0
  %236 = vmatpush1.msra.mxu0 0.0
  %237 = vmatprep.subr.mxu0 0.0
  %238 = vmatpush1.msra.mxu0 0.0
  %239 = vmatprep.subr.mxu0 0.0
  %240 = vmatpush1.msra.mxu0 0.0
  %241 = vmatprep.subr.mxu0 0.0
  %242 = vmatpush1.msra.mxu0 %v25
  %243 = vmatprep.subr.mxu0 0.0
  %244 = vmatpush2.msra.mxu0 0.0
  %245 = vmatprep.subr.mxu0 0.0
  %246 = vmatpush2.msra.mxu0 0.0
  %247 = vmatprep.subr.mxu0 0.0
  %248 = vmatpush2.msra.mxu0 0.0
  %249 = vmatprep.subr.mxu0 0.0
  %250 = vmatpush2.msra.mxu0 0.0
  %251 = vmatprep.subr.mxu0 0.0
  %252 = vmatpush2.msra.mxu0 0.0
  %253 = vmatprep.subr.mxu0 0.0
  %254 = vmatpush2.msra.mxu0 0.0
  %255 = vmatprep.subr.mxu0 0.0
  %256 = vmatpush2.msra.mxu0 0.0
  %257 = vmatprep.subr.mxu0 0.0
  %258 = vmatpush2.msra.mxu0 0.0
  %259 = vmatprep.subr.mxu0 0.0
  %260 = vmatpush2.msra.mxu0 0.0
  %261 = vmatprep.subr.mxu0 0.0
  %262 = vmatpush2.msra.mxu0 0.0
  %263 = vmatprep.subr.mxu0 0.0
  %264 = vmatpush2.msra.mxu0 0.0
  %265 = vmatprep.subr.mxu0 0.0
  %266 = vmatpush2.msra.mxu0 0.0
  %267 = vmatprep.subr.mxu0 0.0
  %268 = vmatpush2.msra.mxu0 0.0
  %269 = vmatprep.subr.mxu0 0.0
  %270 = vmatpush2.msra.mxu0 0.0
  %271 = vmatprep.subr.mxu0 0.0
  %272 = vmatpush2.msra.mxu0 0.0
  %273 = vmatprep.subr.mxu0 0.0
  %274 = vmatpush2.msra.mxu0 0.0
  %275 = vmatprep.mubr.f32.mxu0 0.0
  %276 = vmatmul.mubr.f32.gmra.mxu0 %v206
  %v277 = vpop.f32.mrf.mxu0
  %v278 = vadd.f32 %v202, %v277
  %v279 = vpop.f32.mrf.mxu0
  %280 = vmatprep.mubr.f32.mxu0 0.0
  %281 = vmatmul.mubr.f32.gmra.mxu0 %v209
  %v282 = vpop.f32.mrf.mxu0
  %v283 = vadd.f32 %v202, %v282
  %v284 = vpop.f32.mrf.mxu0
  %285 = vdwg.mxu0
  %vm286 = vcmask 31744
  %287 = vst.msk [vmem:[%s6] sm:$0xff] %vm286, %v109
  %vm288 = vcmask 24576
  %289 = vst.msk [vmem:[%s6 + $0x8] sm:$0x1] %vm288, %v114
  %290 = vst.msk [vmem:[%s7] sm:$0xff] %vm204, %v278
  %vm291 = vcmask 57344
  %292 = vst.msk [vmem:[%s7 + $0x8] sm:$0x1] %vm291, %v283
  %v293 = vld [vmem:[%s0 + $0x10] sm:$0xff]
  %v294 = vld [vmem:[%s0 + $0x18] sm:$0xff]
  %v295 = vld [vmem:[%s1 + $0x10] sm:$0xff]
  %v296 = vld [vmem:[%s1 + $0x18] sm:$0xff]
  %v297 = vld [vmem:[%s2 + $0x9] sm:$0xff]
  %v298 = vld [vmem:[%s2 + $0x11] sm:$0x1]
  %v299 = vld [vmem:[%s3 + $0x9] sm:$0xff]
  %v300 = vld [vmem:[%s3 + $0x11] sm:$0x1]
  %v302 = vsel %vm35, %v297, 0
  %v305 = vsel %vm35, %v298, 0
  %307 = vmatprep.subr.mxu0 0.0
  %308 = vmatpush1.msra.mxu0 0.0
  %309 = vmatprep.subr.mxu0 0.0
  %310 = vmatpush1.msra.mxu0 0.0
  %311 = vmatprep.subr.mxu0 0.0
  %312 = vmatpush1.msra.mxu0 0.0
  %313 = vmatprep.subr.mxu0 0.0
  %314 = vmatpush1.msra.mxu0 0.0
  %315 = vmatprep.subr.mxu0 0.0
  %316 = vmatpush1.msra.mxu0 0.0
  %317 = vmatprep.subr.mxu0 0.0
  %318 = vmatpush1.msra.mxu0 0.0
  %319 = vmatprep.subr.mxu0 0.0
  %320 = vmatpush1.msra.mxu0 0.0
  %321 = vmatprep.subr.mxu0 0.0
  %322 = vmatpush1.msra.mxu0 0.0
  %323 = vmatprep.subr.mxu0 0.0
  %324 = vmatpush1.msra.mxu0 0.0
  %325 = vmatprep.subr.mxu0 0.0
  %326 = vmatpush1.msra.mxu0 0.0
  %327 = vmatprep.subr.mxu0 0.0
  %328 = vmatpush1.msra.mxu0 0.0
  %329 = vmatprep.subr.mxu0 0.0
  %330 = vmatpush1.msra.mxu0 0.0
  %331 = vmatprep.subr.mxu0 0.0
  %332 = vmatpush1.msra.mxu0 0.0
  %333 = vmatprep.subr.mxu0 0.0
  %334 = vmatpush1.msra.mxu0 0.0
  %335 = vmatprep.subr.mxu0 0.0
  %336 = vmatpush1.msra.mxu0 %v294
  %337 = vmatprep.subr.mxu0 0.0
  %338 = vmatpush1.msra.mxu0 %v293
  %339 = vmatprep.subr.mxu0 0.0
  %340 = vmatpush2.msra.mxu0 0.0
  %341 = vmatprep.subr.mxu0 0.0
  %342 = vmatpush2.msra.mxu0 0.0
  %343 = vmatprep.subr.mxu0 0.0
  %344 = vmatpush2.msra.mxu0 0.0
  %345 = vmatprep.subr.mxu0 0.0
  %346 = vmatpush2.msra.mxu0 0.0
  %347 = vmatprep.subr.mxu0 0.0
  %348 = vmatpush2.msra.mxu0 0.0
  %349 = vmatprep.subr.mxu0 0.0
  %350 = vmatpush2.msra.mxu0 0.0
  %351 = vmatprep.subr.mxu0 0.0
  %352 = vmatpush2.msra.mxu0 0.0
  %353 = vmatprep.subr.mxu0 0.0
  %354 = vmatpush2.msra.mxu0 0.0
  %355 = vmatprep.subr.mxu0 0.0
  %356 = vmatpush2.msra.mxu0 0.0
  %357 = vmatprep.subr.mxu0 0.0
  %358 = vmatpush2.msra.mxu0 0.0
  %359 = vmatprep.subr.mxu0 0.0
  %360 = vmatpush2.msra.mxu0 0.0
  %361 = vmatprep.subr.mxu0 0.0
  %362 = vmatpush2.msra.mxu0 0.0
  %363 = vmatprep.subr.mxu0 0.0
  %364 = vmatpush2.msra.mxu0 0.0
  %365 = vmatprep.subr.mxu0 0.0
  %366 = vmatpush2.msra.mxu0 0.0
  %367 = vmatprep.subr.mxu0 0.0
  %368 = vmatpush2.msra.mxu0 0.0
  %369 = vmatprep.subr.mxu0 0.0
  %370 = vmatpush2.msra.mxu0 0.0
  %371 = vmatprep.mubr.f32.mxu0 0.0
  %372 = vmatmul.mubr.f32.gmra.mxu0 %v302
  %v373 = vpop.f32.mrf.mxu0
  %v374 = vadd.f32 0.0, %v373
  %v375 = vpop.f32.mrf.mxu0
  %376 = vmatprep.mubr.f32.mxu0 0.0
  %377 = vmatmul.mubr.f32.gmra.mxu0 %v305
  %v378 = vpop.f32.mrf.mxu0
  %v379 = vadd.f32 0.0, %v378
  %v380 = vpop.f32.mrf.mxu0
  %381 = vdwg.mxu0
  %v383 = vsel %vm35, %v299, 0
  %v386 = vsel %vm35, %v300, 0
  %388 = vmatprep.subr.mxu0 0.0
  %389 = vmatpush1.msra.mxu0 0.0
  %390 = vmatprep.subr.mxu0 0.0
  %391 = vmatpush1.msra.mxu0 0.0
  %392 = vmatprep.subr.mxu0 0.0
  %393 = vmatpush1.msra.mxu0 0.0
  %394 = vmatprep.subr.mxu0 0.0
  %395 = vmatpush1.msra.mxu0 0.0
  %396 = vmatprep.subr.mxu0 0.0
  %397 = vmatpush1.msra.mxu0 0.0
  %398 = vmatprep.subr.mxu0 0.0
  %399 = vmatpush1.msra.mxu0 0.0
  %400 = vmatprep.subr.mxu0 0.0
  %401 = vmatpush1.msra.mxu0 0.0
  %402 = vmatprep.subr.mxu0 0.0
  %403 = vmatpush1.msra.mxu0 0.0
  %404 = vmatprep.subr.mxu0 0.0
  %405 = vmatpush1.msra.mxu0 0.0
  %406 = vmatprep.subr.mxu0 0.0
  %407 = vmatpush1.msra.mxu0 0.0
  %408 = vmatprep.subr.mxu0 0.0
  %409 = vmatpush1.msra.mxu0 0.0
  %410 = vmatprep.subr.mxu0 0.0
  %411 = vmatpush1.msra.mxu0 0.0
  %412 = vmatprep.subr.mxu0 0.0
  %413 = vmatpush1.msra.mxu0 0.0
  %414 = vmatprep.subr.mxu0 0.0
  %415 = vmatpush1.msra.mxu0 0.0
  %416 = vmatprep.subr.mxu0 0.0
  %417 = vmatpush1.msra.mxu0 %v296
  %418 = vmatprep.subr.mxu0 0.0
  %419 = vmatpush1.msra.mxu0 %v295
  %420 = vmatprep.subr.mxu0 0.0
  %421 = vmatpush2.msra.mxu0 0.0
  %422 = vmatprep.subr.mxu0 0.0
  %423 = vmatpush2.msra.mxu0 0.0
  %424 = vmatprep.subr.mxu0 0.0
  %425 = vmatpush2.msra.mxu0 0.0
  %426 = vmatprep.subr.mxu0 0.0
  %427 = vmatpush2.msra.mxu0 0.0
  %428 = vmatprep.subr.mxu0 0.0
  %429 = vmatpush2.msra.mxu0 0.0
  %430 = vmatprep.subr.mxu0 0.0
  %431 = vmatpush2.msra.mxu0 0.0
  %432 = vmatprep.subr.mxu0 0.0
  %433 = vmatpush2.msra.mxu0 0.0
  %434 = vmatprep.subr.mxu0 0.0
  %435 = vmatpush2.msra.mxu0 0.0
  %436 = vmatprep.subr.mxu0 0.0
  %437 = vmatpush2.msra.mxu0 0.0
  %438 = vmatprep.subr.mxu0 0.0
  %439 = vmatpush2.msra.mxu0 0.0
  %440 = vmatprep.subr.mxu0 0.0
  %441 = vmatpush2.msra.mxu0 0.0
  %442 = vmatprep.subr.mxu0 0.0
  %443 = vmatpush2.msra.mxu0 0.0
  %444 = vmatprep.subr.mxu0 0.0
  %445 = vmatpush2.msra.mxu0 0.0
  %446 = vmatprep.subr.mxu0 0.0
  %447 = vmatpush2.msra.mxu0 0.0
  %448 = vmatprep.subr.mxu0 0.0
  %449 = vmatpush2.msra.mxu0 0.0
  %450 = vmatprep.subr.mxu0 0.0
  %451 = vmatpush2.msra.mxu0 0.0
  %452 = vmatprep.mubr.f32.mxu0 0.0
  %453 = vmatmul.mubr.f32.gmra.mxu0 %v383
  %v454 = vpop.f32.mrf.mxu0
  %v455 = vadd.f32 0.0, %v454
  %v456 = vpop.f32.mrf.mxu0
  %457 = vmatprep.mubr.f32.mxu0 0.0
  %458 = vmatmul.mubr.f32.gmra.mxu0 %v386
  %v459 = vpop.f32.mrf.mxu0
  %v460 = vadd.f32 0.0, %v459
  %v461 = vpop.f32.mrf.mxu0
  %462 = vdwg.mxu0
  %v464 = vsel %vm204, %v455, 0
  %v467 = vsel %vm204, %v460, 0
  %469 = vmatprep.subr.mxu0 0.0
  %470 = vmatpush1.msra.mxu0 0.0
  %471 = vmatprep.subr.mxu0 0.0
  %472 = vmatpush1.msra.mxu0 0.0
  %473 = vmatprep.subr.mxu0 0.0
  %474 = vmatpush1.msra.mxu0 0.0
  %475 = vmatprep.subr.mxu0 0.0
  %476 = vmatpush1.msra.mxu0 0.0
  %477 = vmatprep.subr.mxu0 0.0
  %478 = vmatpush1.msra.mxu0 0.0
  %479 = vmatprep.subr.mxu0 0.0
  %480 = vmatpush1.msra.mxu0 0.0
  %481 = vmatprep.subr.mxu0 0.0
  %482 = vmatpush1.msra.mxu0 0.0
  %483 = vmatprep.subr.mxu0 0.0
  %484 = vmatpush1.msra.mxu0 0.0
  %485 = vmatprep.subr.mxu0 0.0
  %486 = vmatpush1.msra.mxu0 0.0
  %487 = vmatprep.subr.mxu0 0.0
  %488 = vmatpush1.msra.mxu0 0.0
  %489 = vmatprep.subr.mxu0 0.0
  %490 = vmatpush1.msra.mxu0 0.0
  %491 = vmatprep.subr.mxu0 0.0
  %492 = vmatpush1.msra.mxu0 0.0
  %493 = vmatprep.subr.mxu0 0.0
  %494 = vmatpush1.msra.mxu0 0.0
  %495 = vmatprep.subr.mxu0 0.0
  %496 = vmatpush1.msra.mxu0 0.0
  %497 = vmatprep.subr.mxu0 0.0
  %498 = vmatpush1.msra.mxu0 0.0
  %499 = vmatprep.subr.mxu0 0.0
  %500 = vmatpush1.msra.mxu0 %v25
  %501 = vmatprep.subr.mxu0 0.0
  %502 = vmatpush2.msra.mxu0 0.0
  %503 = vmatprep.subr.mxu0 0.0
  %504 = vmatpush2.msra.mxu0 0.0
  %505 = vmatprep.subr.mxu0 0.0
  %506 = vmatpush2.msra.mxu0 0.0
  %507 = vmatprep.subr.mxu0 0.0
  %508 = vmatpush2.msra.mxu0 0.0
  %509 = vmatprep.subr.mxu0 0.0
  %510 = vmatpush2.msra.mxu0 0.0
  %511 = vmatprep.subr.mxu0 0.0
  %512 = vmatpush2.msra.mxu0 0.0
  %513 = vmatprep.subr.mxu0 0.0
  %514 = vmatpush2.msra.mxu0 0.0
  %515 = vmatprep.subr.mxu0 0.0
  %516 = vmatpush2.msra.mxu0 0.0
  %517 = vmatprep.subr.mxu0 0.0
  %518 = vmatpush2.msra.mxu0 0.0
  %519 = vmatprep.subr.mxu0 0.0
  %520 = vmatpush2.msra.mxu0 0.0
  %521 = vmatprep.subr.mxu0 0.0
  %522 = vmatpush2.msra.mxu0 0.0
  %523 = vmatprep.subr.mxu0 0.0
  %524 = vmatpush2.msra.mxu0 0.0
  %525 = vmatprep.subr.mxu0 0.0
  %526 = vmatpush2.msra.mxu0 0.0
  %527 = vmatprep.subr.mxu0 0.0
  %528 = vmatpush2.msra.mxu0 0.0
  %529 = vmatprep.subr.mxu0 0.0
  %530 = vmatpush2.msra.mxu0 0.0
  %531 = vmatprep.subr.mxu0 0.0
  %532 = vmatpush2.msra.mxu0 0.0
  %533 = vmatprep.mubr.f32.mxu0 0.0
  %534 = vmatmul.mubr.f32.gmra.mxu0 %v464
  %v535 = vpop.f32.mrf.mxu0
  %v536 = vadd.f32 %v202, %v535
  %v537 = vpop.f32.mrf.mxu0
  %538 = vmatprep.mubr.f32.mxu0 0.0
  %539 = vmatmul.mubr.f32.gmra.mxu0 %v467
  %v540 = vpop.f32.mrf.mxu0
  %v541 = vadd.f32 %v202, %v540
  %v542 = vpop.f32.mrf.mxu0
  %543 = vdwg.mxu0
  %544 = vst.msk [vmem:[%s6 + $0x9] sm:$0xff] %vm286, %v374
  %545 = vst.msk [vmem:[%s6 + $0x11] sm:$0x1] %vm288, %v379
  %546 = vst.msk [vmem:[%s7 + $0x9] sm:$0xff] %vm204, %v536
  %547 = vst.msk [vmem:[%s7 + $0x11] sm:$0x1] %vm291, %v541
  // Predicated region
  $region26: #{siamrpn_forward.9} parent=0 // pred_check
    _
  $region27: #{siamrpn_forward.9} parent=0 // pred_check_branch
    %549 = sbr.rel (0) target = $region29
  $region28: #{siamrpn_forward.9} parent=0 // pred_region
    _
  $region29: #{siamrpn_forward.9} parent=0 // pred_fallthru
    _
  // Predicated region
  $region30: #{siamrpn_forward.9} parent=0 // pred_check
    _
  $region31: #{siamrpn_forward.9} parent=0 // pred_check_branch
    %551 = sbr.rel (0) target = $region33
  $region32: #{siamrpn_forward.9} parent=0 // pred_region
    _
  $region33: #{siamrpn_forward.9} parent=0 // pred_fallthru
    _
  // Predicated region
  $region34: #{siamrpn_forward.9} parent=0 // pred_check
    _
  $region35: #{siamrpn_forward.9} parent=0 // pred_check_branch
    %553 = sbr.rel (0) target = $region37
  $region36: #{siamrpn_forward.9} parent=0 // pred_region
    _
  $region37: #{siamrpn_forward.9} parent=0 // pred_fallthru
    _
  // Predicated region
  $region38: #{siamrpn_forward.9} parent=0 // pred_check
    _
  $region39: #{siamrpn_forward.9} parent=0 // pred_check_branch
    %555 = sbr.rel (0) target = $region41
  $region40: #{siamrpn_forward.9} parent=0 // pred_region
    _
  $region41: #{siamrpn_forward.9} parent=0 // pred_fallthru
    _

</llo_original>
